<compile_context>
chip_gen: v7x
topology: tpu7x:2x2x1
jax: 0.10.0
libtpu: 0.0.40
codegen_flags: <defaults>
</compile_context>

<pallas_src>
import jax
import jax.numpy as jnp
from jax.experimental import pallas as pl
from jax.experimental.pallas import tpu as pltpu


_DW_K = 31
_DW_HALF = (_DW_K - 1) // 2
_PAD = 128                       # 128-lane-aligned zero pad on each side
_BN_EPS = 1e-5
_LN_EPS = 1e-12
_MATMUL_DTYPE = jnp.bfloat16     # bf16 dense operands, f32 accumulation


# --------------------------------------------------------------------------
# Fused kernel: dense -> pw1 -> GLU -> depthwise -> BN -> pw2 -> (+res) -> LN
# Everything operates on flat (M, *) rows with M = B * 3; lane dim = H.
# --------------------------------------------------------------------------
def _bert_output_kernel(x_ref, w_ref, db_ref, res_ref,
                        a1a_ref, a1b_ref, b1a_ref, b1b_ref,
                        wd_ref, bns_ref, bnb_ref,
                        a2_ref, b2_ref, lng_ref, lnb_ref,
                        o_ref):
    M, H = o_ref.shape

    # ---- dense: (M, I)bf16 @ (I, H)bf16 -> f32, + bias ----------------------
    y = jnp.dot(x_ref[...], w_ref[...], preferred_element_type=jnp.float32)
    y = y + db_ref[...]                                   # (M, H) f32

    # ---- pointwise conv 1 (3 -> 6 per batch), as block-diagonal row mixing --
    # ga/gb rows share y's (batch, channel) row layout, so GLU stays row-wise.
    a1a = a1a_ref[...]                                    # (M, M)
    a1b = a1b_ref[...]                                    # (M, M)
    ga = jnp.broadcast_to(b1a_ref[...], (M, H))           # (M, H)
    gb = jnp.broadcast_to(b1b_ref[...], (M, H))
    for r in range(M):                                    # tiny, unrolled
        yr = y[r:r + 1, :]                                # (1, H)
        ga = ga + a1a[:, r:r + 1] * yr                    # VPU broadcast-FMA
        gb = gb + a1b[:, r:r + 1] * yr

    # ---- GLU: a * sigmoid(b); sigmoid via tanh keeps it on the EUP ----------
    h = ga * (0.5 * (jnp.tanh(0.5 * gb) + 1.0))           # (M, H)

    # ---- depthwise conv, kernel=31, 'same' zero padding ----------------------
    # Padded row stays in registers; shifted views are register lane-shifts,
    # not unaligned VMEM loads, and nothing has to be re-zeroed.
    zpad = jnp.zeros((M, _PAD), jnp.float32)
    hp = jnp.concatenate([zpad, h, zpad], axis=-1)        # (M, H + 256)
    wd = wd_ref[...]                                      # (M, 31) per-row taps
    acc = jnp.zeros((M, H), jnp.float32)
    for k in range(_DW_K):
        s = _PAD - _DW_HALF + k                           # 113 .. 143
        acc = acc + wd[:, k:k + 1] * hp[:, s:s + H]

    # ---- BatchNorm1d(3), inference: folded per-row affine -------------------
    hbn = acc * bns_ref[...] + bnb_ref[...]

    # ---- pointwise conv 2 (3 -> 3 per batch), block-diagonal row mixing -----
    a2m = a2_ref[...]                                     # (M, M)
    t2 = jnp.broadcast_to(b2_ref[...], (M, H))
    for r in range(M):
        t2 = t2 + a2m[:, r:r + 1] * hbn[r:r + 1, :]

    # ---- dropout(eval)=identity; residual + LayerNorm (eps=1e-12) -----------
    z = t2 + res_ref[...].astype(jnp.float32)
    mu = jnp.mean(z, axis=-1, keepdims=True)
    zc = z - mu
    var = jnp.mean(zc * zc, axis=-1, keepdims=True)
    zn = zc * jax.lax.rsqrt(var + _LN_EPS)
    o_ref[...] = (zn * lng_ref[...] + lnb_ref[...]).astype(o_ref.dtype)


def bert_output_forward(hidden_states, input_tensor, params):
    """hidden_states (B, 3, intermediate), input_tensor (B, 3, hidden)."""
    B, C, I = hidden_states.shape
    assert C == 3, "ConvModule in BertOutput is constructed with in_channels=3"
    H = params["dense_w"].shape[0]
    M = B * C
    f32 = jnp.float32

    # ---- host-side (free / tiny) parameter & layout prep --------------------
    x2d = hidden_states.reshape(M, I).astype(_MATMUL_DTYPE)       # (M, I) bf16
    w_mat = jnp.transpose(params["dense_w"], (1, 0)).astype(_MATMUL_DTYPE)
    db = params["dense_b"].reshape(1, H).astype(f32)
    res2d = input_tensor.reshape(M, H)

    eye_b = jnp.eye(B, dtype=f32)
    w1 = params["pw1_w"][:, :, 0].astype(f32)                     # (6, 3)
    a1a = jnp.kron(eye_b, w1[:C, :])                              # (M, M)
    a1b = jnp.kron(eye_b, w1[C:, :])                              # (M, M)
    b1 = params["pw1_b"].astype(f32)
    b1a = jnp.tile(b1[:C].reshape(C, 1), (B, 1))                  # (M, 1)
    b1b = jnp.tile(b1[C:].reshape(C, 1), (B, 1))

    wd = jnp.tile(params["dw_w"][:, 0, :].astype(f32), (B, 1))    # (M, 31)

    bn_s = (params["bn_gamma"] /
            jnp.sqrt(params["bn_var"] + _BN_EPS)).astype(f32)     # (C,)
    bn_b = (params["bn_beta"] - params["bn_mean"] * bn_s).astype(f32)
    bns = jnp.tile(bn_s.reshape(C, 1), (B, 1))                    # (M, 1)
    bnb = jnp.tile(bn_b.reshape(C, 1), (B, 1))

    w2 = params["pw2_w"][:, :, 0].astype(f32)                     # (3, 3)
    a2 = jnp.kron(eye_b, w2)                                      # (M, M)
    b2 = jnp.tile(params["pw2_b"].reshape(C, 1).astype(f32), (B, 1))

    lng = params["ln_gamma"].reshape(1, H).astype(f32)
    lnb = params["ln_beta"].reshape(1, H).astype(f32)

    vmem = pl.BlockSpec(memory_space=pltpu.MemorySpace.VMEM)
    bytes_in = int(x2d.size) * 2 + int(w_mat.size) * 2 + 4 * (M * H + 2 * H)
    out2d = pl.pallas_call(
        _bert_output_kernel,
        out_shape=jax.ShapeDtypeStruct((M, H), input_tensor.dtype),
        in_specs=[vmem] * 15,
        out_specs=vmem,
        cost_estimate=pl.CostEstimate(
            flops=2 * M * I * H + 6 * M * M * H + 2 * M * _DW_K * H + 16 * M * H,
            transcendentals=M * H,
            bytes_accessed=bytes_in + 4 * M * H),
    )(x2d, w_mat, db, res2d, a1a, a1b, b1a, b1b, wd, bns, bnb, a2, b2, lng, lnb)

    return out2d.reshape(B, C, H)


if __name__ == "__main__":
    B = 2
    C = 3                       # forced by ConvModule(in_channels=3)
    INTERMEDIATE = 512          # config.intermediate_size
    HIDDEN = 384                # config.hidden_size (multiple of 128)

    key = jax.random.PRNGKey(0)
    keys = jax.random.split(key, 16)
    f32 = jnp.float32

    hidden_states = jax.random.normal(keys[0], (B, C, INTERMEDIATE), f32)
    input_tensor = jax.random.normal(keys[1], (B, C, HIDDEN), f32)

    params = dict(
        dense_w=jax.random.normal(keys[2], (HIDDEN, INTERMEDIATE), f32) * 0.05,
        dense_b=jax.random.normal(keys[3], (HIDDEN,), f32) * 0.1,
        pw1_w=jax.random.normal(keys[4], (2 * C, C, 1), f32) * 0.3,
        pw1_b=jax.random.normal(keys[5], (2 * C,), f32) * 0.1,
        dw_w=jax.random.normal(keys[6], (C, 1, _DW_K), f32) * 0.2,
        bn_gamma=1.0 + 0.1 * jax.random.normal(keys[7], (C,), f32),
        bn_beta=0.1 * jax.random.normal(keys[8], (C,), f32),
        bn_mean=0.1 * jax.random.normal(keys[9], (C,), f32),
        bn_var=0.5 + jax.random.uniform(keys[10], (C,), dtype=f32),
        pw2_w=jax.random.normal(keys[11], (C, C, 1), f32) * 0.3,
        pw2_b=jax.random.normal(keys[12], (C,), f32) * 0.1,
        ln_gamma=1.0 + 0.1 * jax.random.normal(keys[13], (HIDDEN,), f32),
        ln_beta=0.1 * jax.random.normal(keys[14], (HIDDEN,), f32),
    )

    fwd = jax.jit(bert_output_forward)
    out = fwd(hidden_states, input_tensor, params)
    out = jax.block_until_ready(out)

    # -------- pure-JAX reference (same inference semantics) -----------------
    # The dense operands are routed through bf16 exactly as the kernel does
    # (intentional optimization); everything downstream is f32.
    hp_prec = jax.lax.Precision.HIGHEST
    xq = hidden_states.astype(jnp.bfloat16).astype(f32)
    wq = params["dense_w"].astype(jnp.bfloat16).astype(f32)
    y = (jnp.einsum("bci,hi->bch", xq, wq, precision=hp_prec)
         + params["dense_b"][None, None, :])
    t = (jnp.einsum("oc,bch->boh", params["pw1_w"][:, :, 0], y,
                    precision=hp_prec) + params["pw1_b"][None, :, None])
    h = t[:, :C] * jax.nn.sigmoid(t[:, C:])
    hdw = jax.lax.conv_general_dilated(
        h, params["dw_w"], (1,), [(_DW_HALF, _DW_HALF)],
        dimension_numbers=("NCH", "OIH", "NCH"),
        feature_group_count=C, precision=hp_prec)
    scale = params["bn_gamma"] / jnp.sqrt(params["bn_var"] + _BN_EPS)
    shift = params["bn_beta"] - params["bn_mean"] * scale
    hbn = hdw * scale[None, :, None] + shift[None, :, None]
    t2 = (jnp.einsum("oc,bch->boh", params["pw2_w"][:, :, 0], hbn,
                     precision=hp_prec) + params["pw2_b"][None, :, None])
    z = t2 + input_tensor
    mu = z.mean(-1, keepdims=True)
    var = ((z - mu) ** 2).mean(-1, keepdims=True)
    ref = ((z - mu) / jnp.sqrt(var + _LN_EPS)
           * params["ln_gamma"][None, None, :]
           + params["ln_beta"][None, None, :])

    assert out.shape == ref.shape, (out.shape, ref.shape)
    max_err = float(jnp.max(jnp.abs(out - ref)))
    assert jnp.allclose(out, ref, atol=2e-3, rtol=2e-3), max_err

    print("KERNEL_OK")
</pallas_src>

<mosaic_0001>
module attributes {stable_mosaic.version = 11 : i64} {
  func.func @_bert_output_kernel(%arg0: memref<6x512xbf16, #tpu.memory_space<vmem>>, %arg1: memref<512x384xbf16, #tpu.memory_space<vmem>>, %arg2: memref<1x384xf32, #tpu.memory_space<vmem>>, %arg3: memref<6x384xf32, #tpu.memory_space<vmem>>, %arg4: memref<6x6xf32, #tpu.memory_space<vmem>>, %arg5: memref<6x6xf32, #tpu.memory_space<vmem>>, %arg6: memref<6x1xf32, #tpu.memory_space<vmem>>, %arg7: memref<6x1xf32, #tpu.memory_space<vmem>>, %arg8: memref<6x31xf32, #tpu.memory_space<vmem>>, %arg9: memref<6x1xf32, #tpu.memory_space<vmem>>, %arg10: memref<6x1xf32, #tpu.memory_space<vmem>>, %arg11: memref<6x6xf32, #tpu.memory_space<vmem>>, %arg12: memref<6x1xf32, #tpu.memory_space<vmem>>, %arg13: memref<1x384xf32, #tpu.memory_space<vmem>>, %arg14: memref<1x384xf32, #tpu.memory_space<vmem>>, %arg15: memref<6x384xf32, #tpu.memory_space<vmem>>) attributes {dimension_semantics = [], scalar_prefetch = 0 : i64, scratch_operands = 0 : i64, tpu.core_type = #tpu.core_type<tc>} {
    %c0 = arith.constant 0 : index
    %c0_0 = arith.constant 0 : index
    %0 = vector.load %arg0[%c0, %c0_0] : memref<6x512xbf16, #tpu.memory_space<vmem>>, vector<6x512xbf16>
    %c0_1 = arith.constant 0 : index
    %c0_2 = arith.constant 0 : index
    %1 = vector.load %arg1[%c0_1, %c0_2] : memref<512x384xbf16, #tpu.memory_space<vmem>>, vector<512x384xbf16>
    %cst = arith.constant dense<0.000000e+00> : vector<6x384xf32>
    %2 = tpu.matmul %0, %1, %cst {dimension_numbers = #tpu.dot_dimension_numbers<[1], [0], [0], [1], [0, 0, 1, 1], [], []>} : vector<6x512xbf16>, vector<512x384xbf16>, vector<6x384xf32> -> vector<6x384xf32>
    %c0_3 = arith.constant 0 : index
    %c0_4 = arith.constant 0 : index
    %3 = vector.load %arg2[%c0_3, %c0_4] : memref<1x384xf32, #tpu.memory_space<vmem>>, vector<1x384xf32>
    %4 = vector.broadcast %3 : vector<1x384xf32> to vector<6x384xf32>
    %5 = arith.addf %2, %4 : vector<6x384xf32>
    %c0_5 = arith.constant 0 : index
    %c0_6 = arith.constant 0 : index
    %6 = vector.load %arg4[%c0_5, %c0_6] : memref<6x6xf32, #tpu.memory_space<vmem>>, vector<6x6xf32>
    %c0_7 = arith.constant 0 : index
    %c0_8 = arith.constant 0 : index
    %7 = vector.load %arg5[%c0_7, %c0_8] : memref<6x6xf32, #tpu.memory_space<vmem>>, vector<6x6xf32>
    %c0_9 = arith.constant 0 : index
    %c0_10 = arith.constant 0 : index
    %8 = vector.load %arg6[%c0_9, %c0_10] : memref<6x1xf32, #tpu.memory_space<vmem>>, vector<6x1xf32>
    %9 = vector.shape_cast %8 : vector<6x1xf32> to vector<6x1xf32>
    %10 = vector.broadcast %9 : vector<6x1xf32> to vector<6x384xf32>
    %c0_11 = arith.constant 0 : index
    %c0_12 = arith.constant 0 : index
    %11 = vector.load %arg7[%c0_11, %c0_12] : memref<6x1xf32, #tpu.memory_space<vmem>>, vector<6x1xf32>
    %12 = vector.shape_cast %11 : vector<6x1xf32> to vector<6x1xf32>
    %13 = vector.broadcast %12 : vector<6x1xf32> to vector<6x384xf32>
    %14 = vector.extract_strided_slice %5 {offsets = [0, 0], sizes = [1, 384], strides = [1, 1]} : vector<6x384xf32> to vector<1x384xf32>
    %15 = vector.extract_strided_slice %6 {offsets = [0, 0], sizes = [6, 1], strides = [1, 1]} : vector<6x6xf32> to vector<6x1xf32>
    %16 = vector.broadcast %15 : vector<6x1xf32> to vector<6x384xf32>
    %17 = vector.broadcast %14 : vector<1x384xf32> to vector<6x384xf32>
    %18 = arith.mulf %16, %17 : vector<6x384xf32>
    %19 = arith.addf %10, %18 : vector<6x384xf32>
    %20 = vector.extract_strided_slice %7 {offsets = [0, 0], sizes = [6, 1], strides = [1, 1]} : vector<6x6xf32> to vector<6x1xf32>
    %21 = vector.broadcast %20 : vector<6x1xf32> to vector<6x384xf32>
    %22 = vector.broadcast %14 : vector<1x384xf32> to vector<6x384xf32>
    %23 = arith.mulf %21, %22 : vector<6x384xf32>
    %24 = arith.addf %13, %23 : vector<6x384xf32>
    %25 = vector.extract_strided_slice %5 {offsets = [1, 0], sizes = [1, 384], strides = [1, 1]} : vector<6x384xf32> to vector<1x384xf32>
    %26 = vector.extract_strided_slice %6 {offsets = [0, 1], sizes = [6, 1], strides = [1, 1]} : vector<6x6xf32> to vector<6x1xf32>
    %27 = vector.broadcast %26 : vector<6x1xf32> to vector<6x384xf32>
    %28 = vector.broadcast %25 : vector<1x384xf32> to vector<6x384xf32>
    %29 = arith.mulf %27, %28 : vector<6x384xf32>
    %30 = arith.addf %19, %29 : vector<6x384xf32>
    %31 = vector.extract_strided_slice %7 {offsets = [0, 1], sizes = [6, 1], strides = [1, 1]} : vector<6x6xf32> to vector<6x1xf32>
    %32 = vector.broadcast %31 : vector<6x1xf32> to vector<6x384xf32>
    %33 = vector.broadcast %25 : vector<1x384xf32> to vector<6x384xf32>
    %34 = arith.mulf %32, %33 : vector<6x384xf32>
    %35 = arith.addf %24, %34 : vector<6x384xf32>
    %36 = vector.extract_strided_slice %5 {offsets = [2, 0], sizes = [1, 384], strides = [1, 1]} : vector<6x384xf32> to vector<1x384xf32>
    %37 = vector.extract_strided_slice %6 {offsets = [0, 2], sizes = [6, 1], strides = [1, 1]} : vector<6x6xf32> to vector<6x1xf32>
    %38 = vector.broadcast %37 : vector<6x1xf32> to vector<6x384xf32>
    %39 = vector.broadcast %36 : vector<1x384xf32> to vector<6x384xf32>
    %40 = arith.mulf %38, %39 : vector<6x384xf32>
    %41 = arith.addf %30, %40 : vector<6x384xf32>
    %42 = vector.extract_strided_slice %7 {offsets = [0, 2], sizes = [6, 1], strides = [1, 1]} : vector<6x6xf32> to vector<6x1xf32>
    %43 = vector.broadcast %42 : vector<6x1xf32> to vector<6x384xf32>
    %44 = vector.broadcast %36 : vector<1x384xf32> to vector<6x384xf32>
    %45 = arith.mulf %43, %44 : vector<6x384xf32>
    %46 = arith.addf %35, %45 : vector<6x384xf32>
    %47 = vector.extract_strided_slice %5 {offsets = [3, 0], sizes = [1, 384], strides = [1, 1]} : vector<6x384xf32> to vector<1x384xf32>
    %48 = vector.extract_strided_slice %6 {offsets = [0, 3], sizes = [6, 1], strides = [1, 1]} : vector<6x6xf32> to vector<6x1xf32>
    %49 = vector.broadcast %48 : vector<6x1xf32> to vector<6x384xf32>
    %50 = vector.broadcast %47 : vector<1x384xf32> to vector<6x384xf32>
    %51 = arith.mulf %49, %50 : vector<6x384xf32>
    %52 = arith.addf %41, %51 : vector<6x384xf32>
    %53 = vector.extract_strided_slice %7 {offsets = [0, 3], sizes = [6, 1], strides = [1, 1]} : vector<6x6xf32> to vector<6x1xf32>
    %54 = vector.broadcast %53 : vector<6x1xf32> to vector<6x384xf32>
    %55 = vector.broadcast %47 : vector<1x384xf32> to vector<6x384xf32>
    %56 = arith.mulf %54, %55 : vector<6x384xf32>
    %57 = arith.addf %46, %56 : vector<6x384xf32>
    %58 = vector.extract_strided_slice %5 {offsets = [4, 0], sizes = [1, 384], strides = [1, 1]} : vector<6x384xf32> to vector<1x384xf32>
    %59 = vector.extract_strided_slice %6 {offsets = [0, 4], sizes = [6, 1], strides = [1, 1]} : vector<6x6xf32> to vector<6x1xf32>
    %60 = vector.broadcast %59 : vector<6x1xf32> to vector<6x384xf32>
    %61 = vector.broadcast %58 : vector<1x384xf32> to vector<6x384xf32>
    %62 = arith.mulf %60, %61 : vector<6x384xf32>
    %63 = arith.addf %52, %62 : vector<6x384xf32>
    %64 = vector.extract_strided_slice %7 {offsets = [0, 4], sizes = [6, 1], strides = [1, 1]} : vector<6x6xf32> to vector<6x1xf32>
    %65 = vector.broadcast %64 : vector<6x1xf32> to vector<6x384xf32>
    %66 = vector.broadcast %58 : vector<1x384xf32> to vector<6x384xf32>
    %67 = arith.mulf %65, %66 : vector<6x384xf32>
    %68 = arith.addf %57, %67 : vector<6x384xf32>
    %69 = vector.extract_strided_slice %5 {offsets = [5, 0], sizes = [1, 384], strides = [1, 1]} : vector<6x384xf32> to vector<1x384xf32>
    %70 = vector.extract_strided_slice %6 {offsets = [0, 5], sizes = [6, 1], strides = [1, 1]} : vector<6x6xf32> to vector<6x1xf32>
    %71 = vector.broadcast %70 : vector<6x1xf32> to vector<6x384xf32>
    %72 = vector.broadcast %69 : vector<1x384xf32> to vector<6x384xf32>
    %73 = arith.mulf %71, %72 : vector<6x384xf32>
    %74 = arith.addf %63, %73 : vector<6x384xf32>
    %75 = vector.extract_strided_slice %7 {offsets = [0, 5], sizes = [6, 1], strides = [1, 1]} : vector<6x6xf32> to vector<6x1xf32>
    %76 = vector.broadcast %75 : vector<6x1xf32> to vector<6x384xf32>
    %77 = vector.broadcast %69 : vector<1x384xf32> to vector<6x384xf32>
    %78 = arith.mulf %76, %77 : vector<6x384xf32>
    %79 = arith.addf %68, %78 : vector<6x384xf32>
    %cst_13 = arith.constant 5.000000e-01 : f32
    %80 = vector.broadcast %cst_13 : f32 to vector<6x384xf32>
    %81 = arith.mulf %80, %79 : vector<6x384xf32>
    %82 = math.tanh %81 : vector<6x384xf32>
    %cst_14 = arith.constant 1.000000e+00 : f32
    %83 = vector.broadcast %cst_14 : f32 to vector<6x384xf32>
    %84 = arith.addf %82, %83 : vector<6x384xf32>
    %cst_15 = arith.constant 5.000000e-01 : f32
    %85 = vector.broadcast %cst_15 : f32 to vector<6x384xf32>
    %86 = arith.mulf %85, %84 : vector<6x384xf32>
    %87 = arith.mulf %74, %86 : vector<6x384xf32>
    %cst_16 = arith.constant 0.000000e+00 : f32
    %88 = vector.broadcast %cst_16 : f32 to vector<6x128xf32>
    %89 = tpu.concatenate %88, %87, %88 in 1 : vector<6x128xf32>, vector<6x384xf32>, vector<6x128xf32> -> vector<6x640xf32>
    %c0_17 = arith.constant 0 : index
    %c0_18 = arith.constant 0 : index
    %90 = vector.load %arg8[%c0_17, %c0_18] : memref<6x31xf32, #tpu.memory_space<vmem>>, vector<6x31xf32>
    %cst_19 = arith.constant 0.000000e+00 : f32
    %91 = vector.broadcast %cst_19 : f32 to vector<6x384xf32>
    %92 = vector.extract_strided_slice %90 {offsets = [0, 0], sizes = [6, 1], strides = [1, 1]} : vector<6x31xf32> to vector<6x1xf32>
    %93 = vector.extract_strided_slice %89 {offsets = [0, 113], sizes = [6, 384], strides = [1, 1]} : vector<6x640xf32> to vector<6x384xf32>
    %94 = vector.broadcast %92 : vector<6x1xf32> to vector<6x384xf32>
    %95 = arith.mulf %94, %93 : vector<6x384xf32>
    %96 = arith.addf %91, %95 : vector<6x384xf32>
    %97 = vector.extract_strided_slice %90 {offsets = [0, 1], sizes = [6, 1], strides = [1, 1]} : vector<6x31xf32> to vector<6x1xf32>
    %98 = vector.extract_strided_slice %89 {offsets = [0, 114], sizes = [6, 384], strides = [1, 1]} : vector<6x640xf32> to vector<6x384xf32>
    %99 = vector.broadcast %97 : vector<6x1xf32> to vector<6x384xf32>
    %100 = arith.mulf %99, %98 : vector<6x384xf32>
    %101 = arith.addf %96, %100 : vector<6x384xf32>
    %102 = vector.extract_strided_slice %90 {offsets = [0, 2], sizes = [6, 1], strides = [1, 1]} : vector<6x31xf32> to vector<6x1xf32>
    %103 = vector.extract_strided_slice %89 {offsets = [0, 115], sizes = [6, 384], strides = [1, 1]} : vector<6x640xf32> to vector<6x384xf32>
    %104 = vector.broadcast %102 : vector<6x1xf32> to vector<6x384xf32>
    %105 = arith.mulf %104, %103 : vector<6x384xf32>
    %106 = arith.addf %101, %105 : vector<6x384xf32>
    %107 = vector.extract_strided_slice %90 {offsets = [0, 3], sizes = [6, 1], strides = [1, 1]} : vector<6x31xf32> to vector<6x1xf32>
    %108 = vector.extract_strided_slice %89 {offsets = [0, 116], sizes = [6, 384], strides = [1, 1]} : vector<6x640xf32> to vector<6x384xf32>
    %109 = vector.broadcast %107 : vector<6x1xf32> to vector<6x384xf32>
    %110 = arith.mulf %109, %108 : vector<6x384xf32>
    %111 = arith.addf %106, %110 : vector<6x384xf32>
    %112 = vector.extract_strided_slice %90 {offsets = [0, 4], sizes = [6, 1], strides = [1, 1]} : vector<6x31xf32> to vector<6x1xf32>
    %113 = vector.extract_strided_slice %89 {offsets = [0, 117], sizes = [6, 384], strides = [1, 1]} : vector<6x640xf32> to vector<6x384xf32>
    %114 = vector.broadcast %112 : vector<6x1xf32> to vector<6x384xf32>
    %115 = arith.mulf %114, %113 : vector<6x384xf32>
    %116 = arith.addf %111, %115 : vector<6x384xf32>
    %117 = vector.extract_strided_slice %90 {offsets = [0, 5], sizes = [6, 1], strides = [1, 1]} : vector<6x31xf32> to vector<6x1xf32>
    %118 = vector.extract_strided_slice %89 {offsets = [0, 118], sizes = [6, 384], strides = [1, 1]} : vector<6x640xf32> to vector<6x384xf32>
    %119 = vector.broadcast %117 : vector<6x1xf32> to vector<6x384xf32>
    %120 = arith.mulf %119, %118 : vector<6x384xf32>
    %121 = arith.addf %116, %120 : vector<6x384xf32>
    %122 = vector.extract_strided_slice %90 {offsets = [0, 6], sizes = [6, 1], strides = [1, 1]} : vector<6x31xf32> to vector<6x1xf32>
    %123 = vector.extract_strided_slice %89 {offsets = [0, 119], sizes = [6, 384], strides = [1, 1]} : vector<6x640xf32> to vector<6x384xf32>
    %124 = vector.broadcast %122 : vector<6x1xf32> to vector<6x384xf32>
    %125 = arith.mulf %124, %123 : vector<6x384xf32>
    %126 = arith.addf %121, %125 : vector<6x384xf32>
    %127 = vector.extract_strided_slice %90 {offsets = [0, 7], sizes = [6, 1], strides = [1, 1]} : vector<6x31xf32> to vector<6x1xf32>
    %128 = vector.extract_strided_slice %89 {offsets = [0, 120], sizes = [6, 384], strides = [1, 1]} : vector<6x640xf32> to vector<6x384xf32>
    %129 = vector.broadcast %127 : vector<6x1xf32> to vector<6x384xf32>
    %130 = arith.mulf %129, %128 : vector<6x384xf32>
    %131 = arith.addf %126, %130 : vector<6x384xf32>
    %132 = vector.extract_strided_slice %90 {offsets = [0, 8], sizes = [6, 1], strides = [1, 1]} : vector<6x31xf32> to vector<6x1xf32>
    %133 = vector.extract_strided_slice %89 {offsets = [0, 121], sizes = [6, 384], strides = [1, 1]} : vector<6x640xf32> to vector<6x384xf32>
    %134 = vector.broadcast %132 : vector<6x1xf32> to vector<6x384xf32>
    %135 = arith.mulf %134, %133 : vector<6x384xf32>
    %136 = arith.addf %131, %135 : vector<6x384xf32>
    %137 = vector.extract_strided_slice %90 {offsets = [0, 9], sizes = [6, 1], strides = [1, 1]} : vector<6x31xf32> to vector<6x1xf32>
    %138 = vector.extract_strided_slice %89 {offsets = [0, 122], sizes = [6, 384], strides = [1, 1]} : vector<6x640xf32> to vector<6x384xf32>
    %139 = vector.broadcast %137 : vector<6x1xf32> to vector<6x384xf32>
    %140 = arith.mulf %139, %138 : vector<6x384xf32>
    %141 = arith.addf %136, %140 : vector<6x384xf32>
    %142 = vector.extract_strided_slice %90 {offsets = [0, 10], sizes = [6, 1], strides = [1, 1]} : vector<6x31xf32> to vector<6x1xf32>
    %143 = vector.extract_strided_slice %89 {offsets = [0, 123], sizes = [6, 384], strides = [1, 1]} : vector<6x640xf32> to vector<6x384xf32>
    %144 = vector.broadcast %142 : vector<6x1xf32> to vector<6x384xf32>
    %145 = arith.mulf %144, %143 : vector<6x384xf32>
    %146 = arith.addf %141, %145 : vector<6x384xf32>
    %147 = vector.extract_strided_slice %90 {offsets = [0, 11], sizes = [6, 1], strides = [1, 1]} : vector<6x31xf32> to vector<6x1xf32>
    %148 = vector.extract_strided_slice %89 {offsets = [0, 124], sizes = [6, 384], strides = [1, 1]} : vector<6x640xf32> to vector<6x384xf32>
    %149 = vector.broadcast %147 : vector<6x1xf32> to vector<6x384xf32>
    %150 = arith.mulf %149, %148 : vector<6x384xf32>
    %151 = arith.addf %146, %150 : vector<6x384xf32>
    %152 = vector.extract_strided_slice %90 {offsets = [0, 12], sizes = [6, 1], strides = [1, 1]} : vector<6x31xf32> to vector<6x1xf32>
    %153 = vector.extract_strided_slice %89 {offsets = [0, 125], sizes = [6, 384], strides = [1, 1]} : vector<6x640xf32> to vector<6x384xf32>
    %154 = vector.broadcast %152 : vector<6x1xf32> to vector<6x384xf32>
    %155 = arith.mulf %154, %153 : vector<6x384xf32>
    %156 = arith.addf %151, %155 : vector<6x384xf32>
    %157 = vector.extract_strided_slice %90 {offsets = [0, 13], sizes = [6, 1], strides = [1, 1]} : vector<6x31xf32> to vector<6x1xf32>
    %158 = vector.extract_strided_slice %89 {offsets = [0, 126], sizes = [6, 384], strides = [1, 1]} : vector<6x640xf32> to vector<6x384xf32>
    %159 = vector.broadcast %157 : vector<6x1xf32> to vector<6x384xf32>
    %160 = arith.mulf %159, %158 : vector<6x384xf32>
    %161 = arith.addf %156, %160 : vector<6x384xf32>
    %162 = vector.extract_strided_slice %90 {offsets = [0, 14], sizes = [6, 1], strides = [1, 1]} : vector<6x31xf32> to vector<6x1xf32>
    %163 = vector.extract_strided_slice %89 {offsets = [0, 127], sizes = [6, 384], strides = [1, 1]} : vector<6x640xf32> to vector<6x384xf32>
    %164 = vector.broadcast %162 : vector<6x1xf32> to vector<6x384xf32>
    %165 = arith.mulf %164, %163 : vector<6x384xf32>
    %166 = arith.addf %161, %165 : vector<6x384xf32>
    %167 = vector.extract_strided_slice %90 {offsets = [0, 15], sizes = [6, 1], strides = [1, 1]} : vector<6x31xf32> to vector<6x1xf32>
    %168 = vector.extract_strided_slice %89 {offsets = [0, 128], sizes = [6, 384], strides = [1, 1]} : vector<6x640xf32> to vector<6x384xf32>
    %169 = vector.broadcast %167 : vector<6x1xf32> to vector<6x384xf32>
    %170 = arith.mulf %169, %168 : vector<6x384xf32>
    %171 = arith.addf %166, %170 : vector<6x384xf32>
    %172 = vector.extract_strided_slice %90 {offsets = [0, 16], sizes = [6, 1], strides = [1, 1]} : vector<6x31xf32> to vector<6x1xf32>
    %173 = vector.extract_strided_slice %89 {offsets = [0, 129], sizes = [6, 384], strides = [1, 1]} : vector<6x640xf32> to vector<6x384xf32>
    %174 = vector.broadcast %172 : vector<6x1xf32> to vector<6x384xf32>
    %175 = arith.mulf %174, %173 : vector<6x384xf32>
    %176 = arith.addf %171, %175 : vector<6x384xf32>
    %177 = vector.extract_strided_slice %90 {offsets = [0, 17], sizes = [6, 1], strides = [1, 1]} : vector<6x31xf32> to vector<6x1xf32>
    %178 = vector.extract_strided_slice %89 {offsets = [0, 130], sizes = [6, 384], strides = [1, 1]} : vector<6x640xf32> to vector<6x384xf32>
    %179 = vector.broadcast %177 : vector<6x1xf32> to vector<6x384xf32>
    %180 = arith.mulf %179, %178 : vector<6x384xf32>
    %181 = arith.addf %176, %180 : vector<6x384xf32>
    %182 = vector.extract_strided_slice %90 {offsets = [0, 18], sizes = [6, 1], strides = [1, 1]} : vector<6x31xf32> to vector<6x1xf32>
    %183 = vector.extract_strided_slice %89 {offsets = [0, 131], sizes = [6, 384], strides = [1, 1]} : vector<6x640xf32> to vector<6x384xf32>
    %184 = vector.broadcast %182 : vector<6x1xf32> to vector<6x384xf32>
    %185 = arith.mulf %184, %183 : vector<6x384xf32>
    %186 = arith.addf %181, %185 : vector<6x384xf32>
    %187 = vector.extract_strided_slice %90 {offsets = [0, 19], sizes = [6, 1], strides = [1, 1]} : vector<6x31xf32> to vector<6x1xf32>
    %188 = vector.extract_strided_slice %89 {offsets = [0, 132], sizes = [6, 384], strides = [1, 1]} : vector<6x640xf32> to vector<6x384xf32>
    %189 = vector.broadcast %187 : vector<6x1xf32> to vector<6x384xf32>
    %190 = arith.mulf %189, %188 : vector<6x384xf32>
    %191 = arith.addf %186, %190 : vector<6x384xf32>
    %192 = vector.extract_strided_slice %90 {offsets = [0, 20], sizes = [6, 1], strides = [1, 1]} : vector<6x31xf32> to vector<6x1xf32>
    %193 = vector.extract_strided_slice %89 {offsets = [0, 133], sizes = [6, 384], strides = [1, 1]} : vector<6x640xf32> to vector<6x384xf32>
    %194 = vector.broadcast %192 : vector<6x1xf32> to vector<6x384xf32>
    %195 = arith.mulf %194, %193 : vector<6x384xf32>
    %196 = arith.addf %191, %195 : vector<6x384xf32>
    %197 = vector.extract_strided_slice %90 {offsets = [0, 21], sizes = [6, 1], strides = [1, 1]} : vector<6x31xf32> to vector<6x1xf32>
    %198 = vector.extract_strided_slice %89 {offsets = [0, 134], sizes = [6, 384], strides = [1, 1]} : vector<6x640xf32> to vector<6x384xf32>
    %199 = vector.broadcast %197 : vector<6x1xf32> to vector<6x384xf32>
    %200 = arith.mulf %199, %198 : vector<6x384xf32>
    %201 = arith.addf %196, %200 : vector<6x384xf32>
    %202 = vector.extract_strided_slice %90 {offsets = [0, 22], sizes = [6, 1], strides = [1, 1]} : vector<6x31xf32> to vector<6x1xf32>
    %203 = vector.extract_strided_slice %89 {offsets = [0, 135], sizes = [6, 384], strides = [1, 1]} : vector<6x640xf32> to vector<6x384xf32>
    %204 = vector.broadcast %202 : vector<6x1xf32> to vector<6x384xf32>
    %205 = arith.mulf %204, %203 : vector<6x384xf32>
    %206 = arith.addf %201, %205 : vector<6x384xf32>
    %207 = vector.extract_strided_slice %90 {offsets = [0, 23], sizes = [6, 1], strides = [1, 1]} : vector<6x31xf32> to vector<6x1xf32>
    %208 = vector.extract_strided_slice %89 {offsets = [0, 136], sizes = [6, 384], strides = [1, 1]} : vector<6x640xf32> to vector<6x384xf32>
    %209 = vector.broadcast %207 : vector<6x1xf32> to vector<6x384xf32>
    %210 = arith.mulf %209, %208 : vector<6x384xf32>
    %211 = arith.addf %206, %210 : vector<6x384xf32>
    %212 = vector.extract_strided_slice %90 {offsets = [0, 24], sizes = [6, 1], strides = [1, 1]} : vector<6x31xf32> to vector<6x1xf32>
    %213 = vector.extract_strided_slice %89 {offsets = [0, 137], sizes = [6, 384], strides = [1, 1]} : vector<6x640xf32> to vector<6x384xf32>
    %214 = vector.broadcast %212 : vector<6x1xf32> to vector<6x384xf32>
    %215 = arith.mulf %214, %213 : vector<6x384xf32>
    %216 = arith.addf %211, %215 : vector<6x384xf32>
    %217 = vector.extract_strided_slice %90 {offsets = [0, 25], sizes = [6, 1], strides = [1, 1]} : vector<6x31xf32> to vector<6x1xf32>
    %218 = vector.extract_strided_slice %89 {offsets = [0, 138], sizes = [6, 384], strides = [1, 1]} : vector<6x640xf32> to vector<6x384xf32>
    %219 = vector.broadcast %217 : vector<6x1xf32> to vector<6x384xf32>
    %220 = arith.mulf %219, %218 : vector<6x384xf32>
    %221 = arith.addf %216, %220 : vector<6x384xf32>
    %222 = vector.extract_strided_slice %90 {offsets = [0, 26], sizes = [6, 1], strides = [1, 1]} : vector<6x31xf32> to vector<6x1xf32>
    %223 = vector.extract_strided_slice %89 {offsets = [0, 139], sizes = [6, 384], strides = [1, 1]} : vector<6x640xf32> to vector<6x384xf32>
    %224 = vector.broadcast %222 : vector<6x1xf32> to vector<6x384xf32>
    %225 = arith.mulf %224, %223 : vector<6x384xf32>
    %226 = arith.addf %221, %225 : vector<6x384xf32>
    %227 = vector.extract_strided_slice %90 {offsets = [0, 27], sizes = [6, 1], strides = [1, 1]} : vector<6x31xf32> to vector<6x1xf32>
    %228 = vector.extract_strided_slice %89 {offsets = [0, 140], sizes = [6, 384], strides = [1, 1]} : vector<6x640xf32> to vector<6x384xf32>
    %229 = vector.broadcast %227 : vector<6x1xf32> to vector<6x384xf32>
    %230 = arith.mulf %229, %228 : vector<6x384xf32>
    %231 = arith.addf %226, %230 : vector<6x384xf32>
    %232 = vector.extract_strided_slice %90 {offsets = [0, 28], sizes = [6, 1], strides = [1, 1]} : vector<6x31xf32> to vector<6x1xf32>
    %233 = vector.extract_strided_slice %89 {offsets = [0, 141], sizes = [6, 384], strides = [1, 1]} : vector<6x640xf32> to vector<6x384xf32>
    %234 = vector.broadcast %232 : vector<6x1xf32> to vector<6x384xf32>
    %235 = arith.mulf %234, %233 : vector<6x384xf32>
    %236 = arith.addf %231, %235 : vector<6x384xf32>
    %237 = vector.extract_strided_slice %90 {offsets = [0, 29], sizes = [6, 1], strides = [1, 1]} : vector<6x31xf32> to vector<6x1xf32>
    %238 = vector.extract_strided_slice %89 {offsets = [0, 142], sizes = [6, 384], strides = [1, 1]} : vector<6x640xf32> to vector<6x384xf32>
    %239 = vector.broadcast %237 : vector<6x1xf32> to vector<6x384xf32>
    %240 = arith.mulf %239, %238 : vector<6x384xf32>
    %241 = arith.addf %236, %240 : vector<6x384xf32>
    %242 = vector.extract_strided_slice %90 {offsets = [0, 30], sizes = [6, 1], strides = [1, 1]} : vector<6x31xf32> to vector<6x1xf32>
    %243 = vector.extract_strided_slice %89 {offsets = [0, 143], sizes = [6, 384], strides = [1, 1]} : vector<6x640xf32> to vector<6x384xf32>
    %244 = vector.broadcast %242 : vector<6x1xf32> to vector<6x384xf32>
    %245 = arith.mulf %244, %243 : vector<6x384xf32>
    %246 = arith.addf %241, %245 : vector<6x384xf32>
    %c0_20 = arith.constant 0 : index
    %c0_21 = arith.constant 0 : index
    %247 = vector.load %arg9[%c0_20, %c0_21] : memref<6x1xf32, #tpu.memory_space<vmem>>, vector<6x1xf32>
    %248 = vector.broadcast %247 : vector<6x1xf32> to vector<6x384xf32>
    %249 = arith.mulf %246, %248 : vector<6x384xf32>
    %c0_22 = arith.constant 0 : index
    %c0_23 = arith.constant 0 : index
    %250 = vector.load %arg10[%c0_22, %c0_23] : memref<6x1xf32, #tpu.memory_space<vmem>>, vector<6x1xf32>
    %251 = vector.broadcast %250 : vector<6x1xf32> to vector<6x384xf32>
    %252 = arith.addf %249, %251 : vector<6x384xf32>
    %c0_24 = arith.constant 0 : index
    %c0_25 = arith.constant 0 : index
    %253 = vector.load %arg11[%c0_24, %c0_25] : memref<6x6xf32, #tpu.memory_space<vmem>>, vector<6x6xf32>
    %c0_26 = arith.constant 0 : index
    %c0_27 = arith.constant 0 : index
    %254 = vector.load %arg12[%c0_26, %c0_27] : memref<6x1xf32, #tpu.memory_space<vmem>>, vector<6x1xf32>
    %255 = vector.shape_cast %254 : vector<6x1xf32> to vector<6x1xf32>
    %256 = vector.broadcast %255 : vector<6x1xf32> to vector<6x384xf32>
    %257 = vector.extract_strided_slice %253 {offsets = [0, 0], sizes = [6, 1], strides = [1, 1]} : vector<6x6xf32> to vector<6x1xf32>
    %258 = vector.extract_strided_slice %252 {offsets = [0, 0], sizes = [1, 384], strides = [1, 1]} : vector<6x384xf32> to vector<1x384xf32>
    %259 = vector.broadcast %257 : vector<6x1xf32> to vector<6x384xf32>
    %260 = vector.broadcast %258 : vector<1x384xf32> to vector<6x384xf32>
    %261 = arith.mulf %259, %260 : vector<6x384xf32>
    %262 = arith.addf %256, %261 : vector<6x384xf32>
    %263 = vector.extract_strided_slice %253 {offsets = [0, 1], sizes = [6, 1], strides = [1, 1]} : vector<6x6xf32> to vector<6x1xf32>
    %264 = vector.extract_strided_slice %252 {offsets = [1, 0], sizes = [1, 384], strides = [1, 1]} : vector<6x384xf32> to vector<1x384xf32>
    %265 = vector.broadcast %263 : vector<6x1xf32> to vector<6x384xf32>
    %266 = vector.broadcast %264 : vector<1x384xf32> to vector<6x384xf32>
    %267 = arith.mulf %265, %266 : vector<6x384xf32>
    %268 = arith.addf %262, %267 : vector<6x384xf32>
    %269 = vector.extract_strided_slice %253 {offsets = [0, 2], sizes = [6, 1], strides = [1, 1]} : vector<6x6xf32> to vector<6x1xf32>
    %270 = vector.extract_strided_slice %252 {offsets = [2, 0], sizes = [1, 384], strides = [1, 1]} : vector<6x384xf32> to vector<1x384xf32>
    %271 = vector.broadcast %269 : vector<6x1xf32> to vector<6x384xf32>
    %272 = vector.broadcast %270 : vector<1x384xf32> to vector<6x384xf32>
    %273 = arith.mulf %271, %272 : vector<6x384xf32>
    %274 = arith.addf %268, %273 : vector<6x384xf32>
    %275 = vector.extract_strided_slice %253 {offsets = [0, 3], sizes = [6, 1], strides = [1, 1]} : vector<6x6xf32> to vector<6x1xf32>
    %276 = vector.extract_strided_slice %252 {offsets = [3, 0], sizes = [1, 384], strides = [1, 1]} : vector<6x384xf32> to vector<1x384xf32>
    %277 = vector.broadcast %275 : vector<6x1xf32> to vector<6x384xf32>
    %278 = vector.broadcast %276 : vector<1x384xf32> to vector<6x384xf32>
    %279 = arith.mulf %277, %278 : vector<6x384xf32>
    %280 = arith.addf %274, %279 : vector<6x384xf32>
    %281 = vector.extract_strided_slice %253 {offsets = [0, 4], sizes = [6, 1], strides = [1, 1]} : vector<6x6xf32> to vector<6x1xf32>
    %282 = vector.extract_strided_slice %252 {offsets = [4, 0], sizes = [1, 384], strides = [1, 1]} : vector<6x384xf32> to vector<1x384xf32>
    %283 = vector.broadcast %281 : vector<6x1xf32> to vector<6x384xf32>
    %284 = vector.broadcast %282 : vector<1x384xf32> to vector<6x384xf32>
    %285 = arith.mulf %283, %284 : vector<6x384xf32>
    %286 = arith.addf %280, %285 : vector<6x384xf32>
    %287 = vector.extract_strided_slice %253 {offsets = [0, 5], sizes = [6, 1], strides = [1, 1]} : vector<6x6xf32> to vector<6x1xf32>
    %288 = vector.extract_strided_slice %252 {offsets = [5, 0], sizes = [1, 384], strides = [1, 1]} : vector<6x384xf32> to vector<1x384xf32>
    %289 = vector.broadcast %287 : vector<6x1xf32> to vector<6x384xf32>
    %290 = vector.broadcast %288 : vector<1x384xf32> to vector<6x384xf32>
    %291 = arith.mulf %289, %290 : vector<6x384xf32>
    %292 = arith.addf %286, %291 : vector<6x384xf32>
    %c0_28 = arith.constant 0 : index
    %c0_29 = arith.constant 0 : index
    %293 = vector.load %arg3[%c0_28, %c0_29] : memref<6x384xf32, #tpu.memory_space<vmem>>, vector<6x384xf32>
    %294 = arith.addf %292, %293 : vector<6x384xf32>
    %cst_30 = arith.constant dense<0.000000e+00> : vector<6xf32>
    %295 = vector.multi_reduction <add>, %294, %cst_30 [1] : vector<6x384xf32> to vector<6xf32>
    %296 = vector.shape_cast %295 : vector<6xf32> to vector<6x1xf32>
    %cst_31 = arith.constant 3.840000e+02 : f32
    %297 = vector.broadcast %cst_31 : f32 to vector<6x1xf32>
    %298 = arith.divf %296, %297 : vector<6x1xf32>
    %299 = vector.broadcast %298 : vector<6x1xf32> to vector<6x384xf32>
    %300 = arith.subf %294, %299 : vector<6x384xf32>
    %301 = arith.mulf %300, %300 : vector<6x384xf32>
    %cst_32 = arith.constant dense<0.000000e+00> : vector<6xf32>
    %302 = vector.multi_reduction <add>, %301, %cst_32 [1] : vector<6x384xf32> to vector<6xf32>
    %303 = vector.shape_cast %302 : vector<6xf32> to vector<6x1xf32>
    %cst_33 = arith.constant 3.840000e+02 : f32
    %304 = vector.broadcast %cst_33 : f32 to vector<6x1xf32>
    %305 = arith.divf %303, %304 : vector<6x1xf32>
    %cst_34 = arith.constant 9.99999996E-13 : f32
    %306 = vector.broadcast %cst_34 : f32 to vector<6x1xf32>
    %307 = arith.addf %305, %306 : vector<6x1xf32>
    %308 = math.rsqrt %307 : vector<6x1xf32>
    %309 = vector.broadcast %308 : vector<6x1xf32> to vector<6x384xf32>
    %310 = arith.mulf %300, %309 : vector<6x384xf32>
    %c0_35 = arith.constant 0 : index
    %c0_36 = arith.constant 0 : index
    %311 = vector.load %arg13[%c0_35, %c0_36] : memref<1x384xf32, #tpu.memory_space<vmem>>, vector<1x384xf32>
    %312 = vector.broadcast %311 : vector<1x384xf32> to vector<6x384xf32>
    %313 = arith.mulf %310, %312 : vector<6x384xf32>
    %c0_37 = arith.constant 0 : index
    %c0_38 = arith.constant 0 : index
    %314 = vector.load %arg14[%c0_37, %c0_38] : memref<1x384xf32, #tpu.memory_space<vmem>>, vector<1x384xf32>
    %315 = vector.broadcast %314 : vector<1x384xf32> to vector<6x384xf32>
    %316 = arith.addf %313, %315 : vector<6x384xf32>
    %c0_39 = arith.constant 0 : index
    %c0_40 = arith.constant 0 : index
    %317 = vector.load %arg15[%c0_39, %c0_40] : memref<6x384xf32, #tpu.memory_space<vmem>>, vector<6x384xf32>
    tpu.vector_store %arg15[%c0_39, %c0_40], %316 {strides = array<i32>} : memref<6x384xf32, #tpu.memory_space<vmem>>, vector<6x384xf32>,
    return
  }
}

</mosaic_0001>

<llo_original>
// kernel: tile.35
$region0: #{tile.35}
  %s0 = inlined_call_operand.vmem [shape: f32[2,3,31], index: 0, kind: input, shape index: {}]
  %s1 = inlined_call_operand.vmem [shape: f32[6,31], index: 1, kind: output, shape index: {}]
  $region1: #{tile.35} parent=0
    #allocation0 [shape = 'u8[8192]{0}', space=vmem, size = 0x2000, scoped, tag = 'scoped mem for input reshape']
    %s3 = sshllo.u32 0, 4
    %s4 = scalar_lea.vmem %s0, 4
    %v5 = vld [vmem:[%s4] sm:%s3]
    %s6 = scalar_lea.vmem [#allocation0], 8
    %7 = vst [vmem:[%s6] sm:%s3] %v5
    %v8 = vld [vmem:[%s0] sm:%s3]
    %9 = vst [vmem:[#allocation0] sm:%s3] %v8
    %v10 = vld [vmem:[#allocation0] sm:$0x7]
    %vm11 = vcmask 252928
    %12 = vst.msk [vmem:[%s1] sm:$0x7] %vm11, %v10
    %s13 = scalar_lea.vmem [#allocation0], 8
    %v14 = vld [vmem:[%s13] sm:$0x7]
    %vm15 = vcmask 252928
    %s16 = scalar_lea.vmem %s1, 3
    %17 = vst.msk [vmem:[%s16] sm:$0x7] %vm15, %v14

// kernel: bert_output_forward.1
$region0: #{bert_output_forward.1}
  #allocation0 [shape = 'u32[]', space=smem, size = 0x4, offset = 0x4, fixed_abs, tag = 'smem constant byte address 0x4 - core index']
  #allocation1 [shape = 'u32[144,128]{1,0:T(1,128)}', space=vmem, size = 0x12000, scoped, tag = 'internal scratch']
  %s0 = inlined_call_operand.vmem [shape: bf16[6,512], index: 0, kind: input, shape index: {}]
  %s1 = inlined_call_operand.vmem [shape: bf16[512,384], index: 1, kind: input, shape index: {}]
  %s2 = inlined_call_operand.vmem [shape: f32[1,384], index: 2, kind: input, shape index: {}]
  %s3 = inlined_call_operand.vmem [shape: f32[6,384], index: 3, kind: input, shape index: {}]
  %s4 = inlined_call_operand.vmem [shape: f32[6,6], index: 4, kind: input, shape index: {}]
  %s5 = inlined_call_operand.vmem [shape: f32[6,6], index: 5, kind: input, shape index: {}]
  %s6 = inlined_call_operand.vmem [shape: f32[6,1], index: 6, kind: input, shape index: {}]
  %s7 = inlined_call_operand.vmem [shape: f32[6,1], index: 7, kind: input, shape index: {}]
  %s8 = inlined_call_operand.vmem [shape: f32[6,31], index: 8, kind: input, shape index: {}]
  %s9 = inlined_call_operand.vmem [shape: f32[6,1], index: 9, kind: input, shape index: {}]
  %s10 = inlined_call_operand.vmem [shape: f32[6,1], index: 10, kind: input, shape index: {}]
  %s11 = inlined_call_operand.vmem [shape: f32[6,6], index: 11, kind: input, shape index: {}]
  %s12 = inlined_call_operand.vmem [shape: f32[6,1], index: 12, kind: input, shape index: {}]
  %s13 = inlined_call_operand.vmem [shape: f32[1,384], index: 13, kind: input, shape index: {}]
  %s14 = inlined_call_operand.vmem [shape: f32[1,384], index: 14, kind: input, shape index: {}]
  %s15 = inlined_call_operand.vmem [shape: f32[6,384], index: 15, kind: output, shape index: {}]
  %s16 = sld [smem:[#allocation0]]
  $region70: #{bert_output_forward.1} parent=0
    _
  %s18 = ssub.s32 1, %s16
  %s19 = scalar_select 0, %s18, %s16
  // Predicated region
  $region2: #{bert_output_forward.1} parent=0 // pred_check
    _
  $region3: #{bert_output_forward.1} parent=0 // pred_check_branch
    %21 = sbr.rel (0) target = $region5
  $region4: #{bert_output_forward.1} parent=0 // pred_region
    _
  $region5: #{bert_output_forward.1} parent=0 // pred_fallthru
    _
  // Predicated region
  $region6: #{bert_output_forward.1} parent=0 // pred_check
    _
  $region7: #{bert_output_forward.1} parent=0 // pred_check_branch
    %23 = sbr.rel (0) target = $region9
  $region8: #{bert_output_forward.1} parent=0 // pred_region
    _
  $region9: #{bert_output_forward.1} parent=0 // pred_fallthru
    _
  // Predicated region
  $region10: #{bert_output_forward.1} parent=0 // pred_check
    _
  $region11: #{bert_output_forward.1} parent=0 // pred_check_branch
    %25 = sbr.rel (0) target = $region13
  $region12: #{bert_output_forward.1} parent=0 // pred_region
    _
  $region13: #{bert_output_forward.1} parent=0 // pred_fallthru
    _
  // Predicated region
  $region14: #{bert_output_forward.1} parent=0 // pred_check
    _
  $region15: #{bert_output_forward.1} parent=0 // pred_check_branch
    %27 = sbr.rel (0) target = $region17
  $region16: #{bert_output_forward.1} parent=0 // pred_region
    _
  $region17: #{bert_output_forward.1} parent=0 // pred_fallthru
    _
  // Predicated region
  $region18: #{bert_output_forward.1} parent=0 // pred_check
    _
  $region19: #{bert_output_forward.1} parent=0 // pred_check_branch
    %29 = sbr.rel (0) target = $region21
  $region20: #{bert_output_forward.1} parent=0 // pred_region
    _
  $region21: #{bert_output_forward.1} parent=0 // pred_fallthru
    _
  // Predicated region
  $region22: #{bert_output_forward.1} parent=0 // pred_check
    _
  $region23: #{bert_output_forward.1} parent=0 // pred_check_branch
    %31 = sbr.rel (0) target = $region25
  $region24: #{bert_output_forward.1} parent=0 // pred_region
    _
  $region25: #{bert_output_forward.1} parent=0 // pred_fallthru
    _
  // Predicated region
  $region26: #{bert_output_forward.1} parent=0 // pred_check
    _
  $region27: #{bert_output_forward.1} parent=0 // pred_check_branch
    %33 = sbr.rel (0) target = $region29
  $region28: #{bert_output_forward.1} parent=0 // pred_region
    _
  $region29: #{bert_output_forward.1} parent=0 // pred_fallthru
    _
  // Predicated region
  $region30: #{bert_output_forward.1} parent=0 // pred_check
    _
  $region31: #{bert_output_forward.1} parent=0 // pred_check_branch
    %35 = sbr.rel (0) target = $region33
  $region32: #{bert_output_forward.1} parent=0 // pred_region
    _
  $region33: #{bert_output_forward.1} parent=0 // pred_fallthru
    _
  // Predicated region
  $region34: #{bert_output_forward.1} parent=0 // pred_check
    _
  $region35: #{bert_output_forward.1} parent=0 // pred_check_branch
    %37 = sbr.rel (0) target = $region37
  $region36: #{bert_output_forward.1} parent=0 // pred_region
    _
  $region37: #{bert_output_forward.1} parent=0 // pred_fallthru
    _
  // Predicated region
  $region38: #{bert_output_forward.1} parent=0 // pred_check
    _
  $region39: #{bert_output_forward.1} parent=0 // pred_check_branch
    %39 = sbr.rel (0) target = $region41
  $region40: #{bert_output_forward.1} parent=0 // pred_region
    _
  $region41: #{bert_output_forward.1} parent=0 // pred_fallthru
    _
  // Predicated region
  $region42: #{bert_output_forward.1} parent=0 // pred_check
    _
  $region43: #{bert_output_forward.1} parent=0 // pred_check_branch
    %41 = sbr.rel (0) target = $region45
  $region44: #{bert_output_forward.1} parent=0 // pred_region
    _
  $region45: #{bert_output_forward.1} parent=0 // pred_fallthru
    _
  // Predicated region
  $region46: #{bert_output_forward.1} parent=0 // pred_check
    _
  $region47: #{bert_output_forward.1} parent=0 // pred_check_branch
    %43 = sbr.rel (0) target = $region49
  $region48: #{bert_output_forward.1} parent=0 // pred_region
    _
  $region49: #{bert_output_forward.1} parent=0 // pred_fallthru
    _
  // Predicated region
  $region50: #{bert_output_forward.1} parent=0 // pred_check
    _
  $region51: #{bert_output_forward.1} parent=0 // pred_check_branch
    %45 = sbr.rel (0) target = $region53
  $region52: #{bert_output_forward.1} parent=0 // pred_region
    _
  $region53: #{bert_output_forward.1} parent=0 // pred_fallthru
    _
  // Predicated region
  $region54: #{bert_output_forward.1} parent=0 // pred_check
    _
  $region55: #{bert_output_forward.1} parent=0 // pred_check_branch
    %47 = sbr.rel (0) target = $region57
  $region56: #{bert_output_forward.1} parent=0 // pred_region
    _
  $region57: #{bert_output_forward.1} parent=0 // pred_fallthru
    _
  // Predicated region
  $region58: #{bert_output_forward.1} parent=0 // pred_check
    _
  $region59: #{bert_output_forward.1} parent=0 // pred_check_branch
    %49 = sbr.rel (0) target = $region61
  $region60: #{bert_output_forward.1} parent=0 // pred_region
    _
  $region61: #{bert_output_forward.1} parent=0 // pred_fallthru
    _
  %v51 = vld [vmem:[%s0] sm:$0x77]
  %v52 = vld [vmem:[%s0 + $0x8] sm:$0x77]
  %v53 = vld [vmem:[%s1] sm:$0xff]
  %v54 = vld [vmem:[%s1 + $0x8] sm:$0xf]
  %v55 = vld [vmem:[%s1 + $0xc] sm:$0xff]
  %v56 = vld [vmem:[%s1 + $0x14] sm:$0xf]
  %v57 = vld [vmem:[%s1 + $0x18] sm:$0xff]
  %v58 = vld [vmem:[%s1 + $0x20] sm:$0xf]
  %v59 = vld [vmem:[%s1 + $0x24] sm:$0xff]
  %v60 = vld [vmem:[%s1 + $0x2c] sm:$0xf]
  %v61 = vld [vmem:[%s1 + $0x30] sm:$0xff]
  %v62 = vld [vmem:[%s1 + $0x38] sm:$0xf]
  %v63 = vld [vmem:[%s1 + $0x3c] sm:$0xff]
  %v64 = vld [vmem:[%s1 + $0x44] sm:$0xf]
  %v65 = vld [vmem:[%s1 + $0x48] sm:$0xff]
  %v66 = vld [vmem:[%s1 + $0x50] sm:$0xf]
  %v67 = vld [vmem:[%s1 + $0x54] sm:$0xff]
  %v68 = vld [vmem:[%s1 + $0x5c] sm:$0xf]
  %v69 = vld [vmem:[%s1 + $0x60] sm:$0xff]
  %v70 = vld [vmem:[%s1 + $0x68] sm:$0xf]
  %v71 = vld [vmem:[%s1 + $0x6c] sm:$0xff]
  %v72 = vld [vmem:[%s1 + $0x74] sm:$0xf]
  %v73 = vld [vmem:[%s1 + $0x78] sm:$0xff]
  %v74 = vld [vmem:[%s1 + $0x80] sm:$0xf]
  %v75 = vld [vmem:[%s1 + $0x84] sm:$0xff]
  %v76 = vld [vmem:[%s1 + $0x8c] sm:$0xf]
  %v77 = vld [vmem:[%s1 + $0x90] sm:$0xff]
  %v78 = vld [vmem:[%s1 + $0x98] sm:$0xf]
  %v79 = vld [vmem:[%s1 + $0x9c] sm:$0xff]
  %v80 = vld [vmem:[%s1 + $0xa4] sm:$0xf]
  %v81 = vld [vmem:[%s1 + $0xa8] sm:$0xff]
  %v82 = vld [vmem:[%s1 + $0xb0] sm:$0xf]
  %v83 = vld [vmem:[%s1 + $0xb4] sm:$0xff]
  %v84 = vld [vmem:[%s1 + $0xbc] sm:$0xf]
  %v85 = vld [vmem:[%s1 + $0xc0] sm:$0xff]
  %v86 = vld [vmem:[%s1 + $0xc8] sm:$0xf]
  %v87 = vld [vmem:[%s1 + $0xcc] sm:$0xff]
  %v88 = vld [vmem:[%s1 + $0xd4] sm:$0xf]
  %v89 = vld [vmem:[%s1 + $0xd8] sm:$0xff]
  %v90 = vld [vmem:[%s1 + $0xe0] sm:$0xf]
  %v91 = vld [vmem:[%s1 + $0xe4] sm:$0xff]
  %v92 = vld [vmem:[%s1 + $0xec] sm:$0xf]
  %v93 = vld [vmem:[%s1 + $0xf0] sm:$0xff]
  %v94 = vld [vmem:[%s1 + $0xf8] sm:$0xf]
  %v95 = vld [vmem:[%s1 + $0xfc] sm:$0xff]
  %v96 = vld [vmem:[%s1 + $0x104] sm:$0xf]
  %v97 = vld [vmem:[%s1 + $0x108] sm:$0xff]
  %v98 = vld [vmem:[%s1 + $0x110] sm:$0xf]
  %v99 = vld [vmem:[%s1 + $0x114] sm:$0xff]
  %v100 = vld [vmem:[%s1 + $0x11c] sm:$0xf]
  %v101 = vld [vmem:[%s1 + $0x120] sm:$0xff]
  %v102 = vld [vmem:[%s1 + $0x128] sm:$0xf]
  %v103 = vld [vmem:[%s1 + $0x12c] sm:$0xff]
  %v104 = vld [vmem:[%s1 + $0x134] sm:$0xf]
  %v105 = vld [vmem:[%s1 + $0x138] sm:$0xff]
  %v106 = vld [vmem:[%s1 + $0x140] sm:$0xf]
  %v107 = vld [vmem:[%s1 + $0x144] sm:$0xff]
  %v108 = vld [vmem:[%s1 + $0x14c] sm:$0xf]
  %v109 = vld [vmem:[%s1 + $0x150] sm:$0xff]
  %v110 = vld [vmem:[%s1 + $0x158] sm:$0xf]
  %v111 = vld [vmem:[%s1 + $0x15c] sm:$0xff]
  %v112 = vld [vmem:[%s1 + $0x164] sm:$0xf]
  %v113 = vld [vmem:[%s1 + $0x168] sm:$0xff]
  %v114 = vld [vmem:[%s1 + $0x170] sm:$0xf]
  %v115 = vld [vmem:[%s1 + $0x174] sm:$0xff]
  %v116 = vld [vmem:[%s1 + $0x17c] sm:$0xf]
  %v117 = vld [vmem:[%s1 + $0x180] sm:$0xff]
  %v118 = vld [vmem:[%s1 + $0x188] sm:$0xf]
  %v119 = vld [vmem:[%s1 + $0x18c] sm:$0xff]
  %v120 = vld [vmem:[%s1 + $0x194] sm:$0xf]
  %v121 = vld [vmem:[%s1 + $0x198] sm:$0xff]
  %v122 = vld [vmem:[%s1 + $0x1a0] sm:$0xf]
  %v123 = vld [vmem:[%s1 + $0x1a4] sm:$0xff]
  %v124 = vld [vmem:[%s1 + $0x1ac] sm:$0xf]
  %v125 = vld [vmem:[%s1 + $0x1b0] sm:$0xff]
  %v126 = vld [vmem:[%s1 + $0x1b8] sm:$0xf]
  %v127 = vld [vmem:[%s1 + $0x1bc] sm:$0xff]
  %v128 = vld [vmem:[%s1 + $0x1c4] sm:$0xf]
  %v129 = vld [vmem:[%s1 + $0x1c8] sm:$0xff]
  %v130 = vld [vmem:[%s1 + $0x1d0] sm:$0xf]
  %v131 = vld [vmem:[%s1 + $0x1d4] sm:$0xff]
  %v132 = vld [vmem:[%s1 + $0x1dc] sm:$0xf]
  %v133 = vld [vmem:[%s1 + $0x1e0] sm:$0xff]
  %v134 = vld [vmem:[%s1 + $0x1e8] sm:$0xf]
  %v135 = vld [vmem:[%s1 + $0x1ec] sm:$0xff]
  %v136 = vld [vmem:[%s1 + $0x1f4] sm:$0xf]
  %v137 = vld [vmem:[%s1 + $0x1f8] sm:$0xff]
  %v138 = vld [vmem:[%s1 + $0x200] sm:$0xf]
  %v139 = vld [vmem:[%s1 + $0x204] sm:$0xff]
  %v140 = vld [vmem:[%s1 + $0x20c] sm:$0xf]
  %v141 = vld [vmem:[%s1 + $0x210] sm:$0xff]
  %v142 = vld [vmem:[%s1 + $0x218] sm:$0xf]
  %v143 = vld [vmem:[%s1 + $0x21c] sm:$0xff]
  %v144 = vld [vmem:[%s1 + $0x224] sm:$0xf]
  %v145 = vld [vmem:[%s1 + $0x228] sm:$0xff]
  %v146 = vld [vmem:[%s1 + $0x230] sm:$0xf]
  %v147 = vld [vmem:[%s1 + $0x234] sm:$0xff]
  %v148 = vld [vmem:[%s1 + $0x23c] sm:$0xf]
  %v149 = vld [vmem:[%s1 + $0x240] sm:$0xff]
  %v150 = vld [vmem:[%s1 + $0x248] sm:$0xf]
  %v151 = vld [vmem:[%s1 + $0x24c] sm:$0xff]
  %v152 = vld [vmem:[%s1 + $0x254] sm:$0xf]
  %v153 = vld [vmem:[%s1 + $0x258] sm:$0xff]
  %v154 = vld [vmem:[%s1 + $0x260] sm:$0xf]
  %v155 = vld [vmem:[%s1 + $0x264] sm:$0xff]
  %v156 = vld [vmem:[%s1 + $0x26c] sm:$0xf]
  %v157 = vld [vmem:[%s1 + $0x270] sm:$0xff]
  %v158 = vld [vmem:[%s1 + $0x278] sm:$0xf]
  %v159 = vld [vmem:[%s1 + $0x27c] sm:$0xff]
  %v160 = vld [vmem:[%s1 + $0x284] sm:$0xf]
  %v161 = vld [vmem:[%s1 + $0x288] sm:$0xff]
  %v162 = vld [vmem:[%s1 + $0x290] sm:$0xf]
  %v163 = vld [vmem:[%s1 + $0x294] sm:$0xff]
  %v164 = vld [vmem:[%s1 + $0x29c] sm:$0xf]
  %v165 = vld [vmem:[%s1 + $0x2a0] sm:$0xff]
  %v166 = vld [vmem:[%s1 + $0x2a8] sm:$0xf]
  %v167 = vld [vmem:[%s1 + $0x2ac] sm:$0xff]
  %v168 = vld [vmem:[%s1 + $0x2b4] sm:$0xf]
  %v169 = vld [vmem:[%s1 + $0x2b8] sm:$0xff]
  %v170 = vld [vmem:[%s1 + $0x2c0] sm:$0xf]
  %v171 = vld [vmem:[%s1 + $0x2c4] sm:$0xff]
  %v172 = vld [vmem:[%s1 + $0x2cc] sm:$0xf]
  %v173 = vld [vmem:[%s1 + $0x2d0] sm:$0xff]
  %v174 = vld [vmem:[%s1 + $0x2d8] sm:$0xf]
  %v175 = vld [vmem:[%s1 + $0x2dc] sm:$0xff]
  %v176 = vld [vmem:[%s1 + $0x2e4] sm:$0xf]
  %v177 = vld [vmem:[%s1 + $0x2e8] sm:$0xff]
  %v178 = vld [vmem:[%s1 + $0x2f0] sm:$0xf]
  %v179 = vld [vmem:[%s1 + $0x2f4] sm:$0xff]
  %v180 = vld [vmem:[%s1 + $0x2fc] sm:$0xf]
  %v181 = vld [vmem:[%s2] sm:$0x7]
  %v183 = vlaneseq
  %v184 = vshrl.u32 %v183, 7
  %v185 = vsub.s32 0, %v184
  %v186 = vrot.slane %v181, %v185
  %v187 = vlaneseq
  %v188 = vshrl.u32 %v187, 7
  %v189 = vsub.s32 1, %v188
  %v190 = vrot.slane %v181, %v189
  %v191 = vlaneseq
  %v192 = vshrl.u32 %v191, 7
  %v193 = vsub.s32 2, %v192
  %v194 = vrot.slane %v181, %v193
  %v200 = vunpack.c.l.b16 %v51
  %v201 = vunpack.c.h.b16 %v51
  %v202 = vunpack.c.l.b16 %v52
  %v203 = vunpack.c.h.b16 %v52
  %v204 = vpack.c.b16 %v200, %v200
  %v205 = vpack.c.b16 %v201, %v201
  %v206 = vpack.c.b16 %v202, %v202
  %v207 = vpack.c.b16 %v203, %v203
  %v340 = vunpack.c.l.b16 %v53
  %v341 = vunpack.c.h.b16 %v53
  %v342 = vunpack.c.l.b16 %v54
  %v343 = vunpack.c.l.b16 %v55
  %v344 = vunpack.c.h.b16 %v55
  %v345 = vunpack.c.l.b16 %v56
  %v346 = vunpack.c.l.b16 %v57
  %v347 = vunpack.c.h.b16 %v57
  %v348 = vunpack.c.l.b16 %v58
  %v349 = vunpack.c.l.b16 %v59
  %v350 = vunpack.c.h.b16 %v59
  %v351 = vunpack.c.l.b16 %v60
  %v352 = vunpack.c.l.b16 %v61
  %v353 = vunpack.c.h.b16 %v61
  %v354 = vunpack.c.l.b16 %v62
  %v355 = vunpack.c.l.b16 %v63
  %v356 = vunpack.c.h.b16 %v63
  %v357 = vunpack.c.l.b16 %v64
  %v358 = vunpack.c.l.b16 %v65
  %v359 = vunpack.c.h.b16 %v65
  %v360 = vunpack.c.l.b16 %v66
  %v361 = vunpack.c.l.b16 %v67
  %v362 = vunpack.c.h.b16 %v67
  %v363 = vunpack.c.l.b16 %v68
  %v364 = vunpack.c.l.b16 %v69
  %v365 = vunpack.c.h.b16 %v69
  %v366 = vunpack.c.l.b16 %v70
  %v367 = vunpack.c.l.b16 %v71
  %v368 = vunpack.c.h.b16 %v71
  %v369 = vunpack.c.l.b16 %v72
  %v370 = vunpack.c.l.b16 %v73
  %v371 = vunpack.c.h.b16 %v73
  %v372 = vunpack.c.l.b16 %v74
  %v373 = vunpack.c.l.b16 %v75
  %v374 = vunpack.c.h.b16 %v75
  %v375 = vunpack.c.l.b16 %v76
  %v376 = vunpack.c.l.b16 %v77
  %v377 = vunpack.c.h.b16 %v77
  %v378 = vunpack.c.l.b16 %v78
  %v379 = vunpack.c.l.b16 %v79
  %v380 = vunpack.c.h.b16 %v79
  %v381 = vunpack.c.l.b16 %v80
  %v382 = vunpack.c.l.b16 %v81
  %v383 = vunpack.c.h.b16 %v81
  %v384 = vunpack.c.l.b16 %v82
  %v385 = vunpack.c.l.b16 %v83
  %v386 = vunpack.c.h.b16 %v83
  %v387 = vunpack.c.l.b16 %v84
  %v388 = vunpack.c.l.b16 %v85
  %v389 = vunpack.c.h.b16 %v85
  %v390 = vunpack.c.l.b16 %v86
  %v391 = vunpack.c.l.b16 %v87
  %v392 = vunpack.c.h.b16 %v87
  %v393 = vunpack.c.l.b16 %v88
  %v394 = vunpack.c.l.b16 %v89
  %v395 = vunpack.c.h.b16 %v89
  %v396 = vunpack.c.l.b16 %v90
  %v397 = vunpack.c.l.b16 %v91
  %v398 = vunpack.c.h.b16 %v91
  %v399 = vunpack.c.l.b16 %v92
  %v400 = vunpack.c.l.b16 %v93
  %v401 = vunpack.c.h.b16 %v93
  %v402 = vunpack.c.l.b16 %v94
  %v403 = vunpack.c.l.b16 %v95
  %v404 = vunpack.c.h.b16 %v95
  %v405 = vunpack.c.l.b16 %v96
  %v406 = vunpack.c.l.b16 %v97
  %v407 = vunpack.c.h.b16 %v97
  %v408 = vunpack.c.l.b16 %v98
  %v409 = vunpack.c.l.b16 %v99
  %v410 = vunpack.c.h.b16 %v99
  %v411 = vunpack.c.l.b16 %v100
  %v412 = vunpack.c.l.b16 %v101
  %v413 = vunpack.c.h.b16 %v101
  %v414 = vunpack.c.l.b16 %v102
  %v415 = vunpack.c.l.b16 %v103
  %v416 = vunpack.c.h.b16 %v103
  %v417 = vunpack.c.l.b16 %v104
  %v418 = vunpack.c.l.b16 %v105
  %v419 = vunpack.c.h.b16 %v105
  %v420 = vunpack.c.l.b16 %v106
  %v421 = vunpack.c.l.b16 %v107
  %v422 = vunpack.c.h.b16 %v107
  %v423 = vunpack.c.l.b16 %v108
  %v424 = vunpack.c.l.b16 %v109
  %v425 = vunpack.c.h.b16 %v109
  %v426 = vunpack.c.l.b16 %v110
  %v427 = vunpack.c.l.b16 %v111
  %v428 = vunpack.c.h.b16 %v111
  %v429 = vunpack.c.l.b16 %v112
  %v430 = vunpack.c.l.b16 %v113
  %v431 = vunpack.c.h.b16 %v113
  %v432 = vunpack.c.l.b16 %v114
  %v433 = vunpack.c.l.b16 %v115
  %v434 = vunpack.c.h.b16 %v115
  %v435 = vunpack.c.l.b16 %v116
  %v436 = vunpack.c.l.b16 %v117
  %v437 = vunpack.c.h.b16 %v117
  %v438 = vunpack.c.l.b16 %v118
  %v439 = vunpack.c.l.b16 %v119
  %v440 = vunpack.c.h.b16 %v119
  %v441 = vunpack.c.l.b16 %v120
  %v442 = vunpack.c.l.b16 %v121
  %v443 = vunpack.c.h.b16 %v121
  %v444 = vunpack.c.l.b16 %v122
  %v445 = vunpack.c.l.b16 %v123
  %v446 = vunpack.c.h.b16 %v123
  %v447 = vunpack.c.l.b16 %v124
  %v448 = vunpack.c.l.b16 %v125
  %v449 = vunpack.c.h.b16 %v125
  %v450 = vunpack.c.l.b16 %v126
  %v451 = vunpack.c.l.b16 %v127
  %v452 = vunpack.c.h.b16 %v127
  %v453 = vunpack.c.l.b16 %v128
  %v454 = vunpack.c.l.b16 %v129
  %v455 = vunpack.c.h.b16 %v129
  %v456 = vunpack.c.l.b16 %v130
  %v457 = vunpack.c.l.b16 %v131
  %v458 = vunpack.c.h.b16 %v131
  %v459 = vunpack.c.l.b16 %v132
  %v460 = vunpack.c.l.b16 %v133
  %v461 = vunpack.c.h.b16 %v133
  %v462 = vunpack.c.l.b16 %v134
  %v463 = vunpack.c.l.b16 %v135
  %v464 = vunpack.c.h.b16 %v135
  %v465 = vunpack.c.l.b16 %v136
  %v466 = vunpack.c.l.b16 %v137
  %v467 = vunpack.c.h.b16 %v137
  %v468 = vunpack.c.l.b16 %v138
  %v469 = vunpack.c.l.b16 %v139
  %v470 = vunpack.c.h.b16 %v139
  %v471 = vunpack.c.l.b16 %v140
  %v472 = vunpack.c.l.b16 %v141
  %v473 = vunpack.c.h.b16 %v141
  %v474 = vunpack.c.l.b16 %v142
  %v475 = vunpack.c.l.b16 %v143
  %v476 = vunpack.c.h.b16 %v143
  %v477 = vunpack.c.l.b16 %v144
  %v478 = vunpack.c.l.b16 %v145
  %v479 = vunpack.c.h.b16 %v145
  %v480 = vunpack.c.l.b16 %v146
  %v481 = vunpack.c.l.b16 %v147
  %v482 = vunpack.c.h.b16 %v147
  %v483 = vunpack.c.l.b16 %v148
  %v484 = vunpack.c.l.b16 %v149
  %v485 = vunpack.c.h.b16 %v149
  %v486 = vunpack.c.l.b16 %v150
  %v487 = vunpack.c.l.b16 %v151
  %v488 = vunpack.c.h.b16 %v151
  %v489 = vunpack.c.l.b16 %v152
  %v490 = vunpack.c.l.b16 %v153
  %v491 = vunpack.c.h.b16 %v153
  %v492 = vunpack.c.l.b16 %v154
  %v493 = vunpack.c.l.b16 %v155
  %v494 = vunpack.c.h.b16 %v155
  %v495 = vunpack.c.l.b16 %v156
  %v496 = vunpack.c.l.b16 %v157
  %v497 = vunpack.c.h.b16 %v157
  %v498 = vunpack.c.l.b16 %v158
  %v499 = vunpack.c.l.b16 %v159
  %v500 = vunpack.c.h.b16 %v159
  %v501 = vunpack.c.l.b16 %v160
  %v502 = vunpack.c.l.b16 %v161
  %v503 = vunpack.c.h.b16 %v161
  %v504 = vunpack.c.l.b16 %v162
  %v505 = vunpack.c.l.b16 %v163
  %v506 = vunpack.c.h.b16 %v163
  %v507 = vunpack.c.l.b16 %v164
  %v508 = vunpack.c.l.b16 %v165
  %v509 = vunpack.c.h.b16 %v165
  %v510 = vunpack.c.l.b16 %v166
  %v511 = vunpack.c.l.b16 %v167
  %v512 = vunpack.c.h.b16 %v167
  %v513 = vunpack.c.l.b16 %v168
  %v514 = vunpack.c.l.b16 %v169
  %v515 = vunpack.c.h.b16 %v169
  %v516 = vunpack.c.l.b16 %v170
  %v517 = vunpack.c.l.b16 %v171
  %v518 = vunpack.c.h.b16 %v171
  %v519 = vunpack.c.l.b16 %v172
  %v520 = vunpack.c.l.b16 %v173
  %v521 = vunpack.c.h.b16 %v173
  %v522 = vunpack.c.l.b16 %v174
  %v523 = vunpack.c.l.b16 %v175
  %v524 = vunpack.c.h.b16 %v175
  %v525 = vunpack.c.l.b16 %v176
  %v526 = vunpack.c.l.b16 %v177
  %v527 = vunpack.c.h.b16 %v177
  %v528 = vunpack.c.l.b16 %v178
  %v529 = vunpack.c.l.b16 %v179
  %v530 = vunpack.c.h.b16 %v179
  %v531 = vunpack.c.l.b16 %v180
  %v532 = vpack.c.b16 %v343, %v340
  %v533 = vpack.c.b16 %v344, %v341
  %v534 = vpack.c.b16 %v345, %v342
  %v535 = vpack.c.b16 %v349, %v346
  %v536 = vpack.c.b16 %v350, %v347
  %v537 = vpack.c.b16 %v351, %v348
  %v538 = vpack.c.b16 %v355, %v352
  %v539 = vpack.c.b16 %v356, %v353
  %v540 = vpack.c.b16 %v357, %v354
  %v541 = vpack.c.b16 %v361, %v358
  %v542 = vpack.c.b16 %v362, %v359
  %v543 = vpack.c.b16 %v363, %v360
  %v544 = vpack.c.b16 %v367, %v364
  %v545 = vpack.c.b16 %v368, %v365
  %v546 = vpack.c.b16 %v369, %v366
  %v547 = vpack.c.b16 %v373, %v370
  %v548 = vpack.c.b16 %v374, %v371
  %v549 = vpack.c.b16 %v375, %v372
  %v550 = vpack.c.b16 %v379, %v376
  %v551 = vpack.c.b16 %v380, %v377
  %v552 = vpack.c.b16 %v381, %v378
  %v553 = vpack.c.b16 %v385, %v382
  %v554 = vpack.c.b16 %v386, %v383
  %v555 = vpack.c.b16 %v387, %v384
  %v556 = vpack.c.b16 %v391, %v388
  %v557 = vpack.c.b16 %v392, %v389
  %v558 = vpack.c.b16 %v393, %v390
  %v559 = vpack.c.b16 %v397, %v394
  %v560 = vpack.c.b16 %v398, %v395
  %v561 = vpack.c.b16 %v399, %v396
  %v562 = vpack.c.b16 %v403, %v400
  %v563 = vpack.c.b16 %v404, %v401
  %v564 = vpack.c.b16 %v405, %v402
  %v565 = vpack.c.b16 %v409, %v406
  %v566 = vpack.c.b16 %v410, %v407
  %v567 = vpack.c.b16 %v411, %v408
  %v568 = vpack.c.b16 %v415, %v412
  %v569 = vpack.c.b16 %v416, %v413
  %v570 = vpack.c.b16 %v417, %v414
  %v571 = vpack.c.b16 %v421, %v418
  %v572 = vpack.c.b16 %v422, %v419
  %v573 = vpack.c.b16 %v423, %v420
  %v574 = vpack.c.b16 %v427, %v424
  %v575 = vpack.c.b16 %v428, %v425
  %v576 = vpack.c.b16 %v429, %v426
  %v577 = vpack.c.b16 %v433, %v430
  %v578 = vpack.c.b16 %v434, %v431
  %v579 = vpack.c.b16 %v435, %v432
  %v580 = vpack.c.b16 %v439, %v436
  %v581 = vpack.c.b16 %v440, %v437
  %v582 = vpack.c.b16 %v441, %v438
  %v583 = vpack.c.b16 %v445, %v442
  %v584 = vpack.c.b16 %v446, %v443
  %v585 = vpack.c.b16 %v447, %v444
  %v586 = vpack.c.b16 %v451, %v448
  %v587 = vpack.c.b16 %v452, %v449
  %v588 = vpack.c.b16 %v453, %v450
  %v589 = vpack.c.b16 %v457, %v454
  %v590 = vpack.c.b16 %v458, %v455
  %v591 = vpack.c.b16 %v459, %v456
  %v592 = vpack.c.b16 %v463, %v460
  %v593 = vpack.c.b16 %v464, %v461
  %v594 = vpack.c.b16 %v465, %v462
  %v595 = vpack.c.b16 %v469, %v466
  %v596 = vpack.c.b16 %v470, %v467
  %v597 = vpack.c.b16 %v471, %v468
  %v598 = vpack.c.b16 %v475, %v472
  %v599 = vpack.c.b16 %v476, %v473
  %v600 = vpack.c.b16 %v477, %v474
  %v601 = vpack.c.b16 %v481, %v478
  %v602 = vpack.c.b16 %v482, %v479
  %v603 = vpack.c.b16 %v483, %v480
  %v604 = vpack.c.b16 %v487, %v484
  %v605 = vpack.c.b16 %v488, %v485
  %v606 = vpack.c.b16 %v489, %v486
  %v607 = vpack.c.b16 %v493, %v490
  %v608 = vpack.c.b16 %v494, %v491
  %v609 = vpack.c.b16 %v495, %v492
  %v610 = vpack.c.b16 %v499, %v496
  %v611 = vpack.c.b16 %v500, %v497
  %v612 = vpack.c.b16 %v501, %v498
  %v613 = vpack.c.b16 %v505, %v502
  %v614 = vpack.c.b16 %v506, %v503
  %v615 = vpack.c.b16 %v507, %v504
  %v616 = vpack.c.b16 %v511, %v508
  %v617 = vpack.c.b16 %v512, %v509
  %v618 = vpack.c.b16 %v513, %v510
  %v619 = vpack.c.b16 %v517, %v514
  %v620 = vpack.c.b16 %v518, %v515
  %v621 = vpack.c.b16 %v519, %v516
  %v622 = vpack.c.b16 %v523, %v520
  %v623 = vpack.c.b16 %v524, %v521
  %v624 = vpack.c.b16 %v525, %v522
  %v625 = vpack.c.b16 %v529, %v526
  %v626 = vpack.c.b16 %v530, %v527
  %v627 = vpack.c.b16 %v531, %v528
  %724 = vmatprep.subr.bf16.mxu0 %v533
  %725 = vmatpush1.bf16.msra.mxu0 %v532
  %726 = vmatprep.subr.bf16.mxu0 %v536
  %727 = vmatpush1.bf16.msra.mxu0 %v535
  %728 = vmatprep.subr.bf16.mxu0 %v539
  %729 = vmatpush1.bf16.msra.mxu0 %v538
  %730 = vmatprep.subr.bf16.mxu0 %v542
  %731 = vmatpush1.bf16.msra.mxu0 %v541
  %732 = vmatprep.subr.bf16.mxu0 %v545
  %733 = vmatpush1.bf16.msra.mxu0 %v544
  %734 = vmatprep.subr.bf16.mxu0 %v548
  %735 = vmatpush1.bf16.msra.mxu0 %v547
  %736 = vmatprep.subr.bf16.mxu0 %v551
  %737 = vmatpush1.bf16.msra.mxu0 %v550
  %738 = vmatprep.subr.bf16.mxu0 %v554
  %739 = vmatpush1.bf16.msra.mxu0 %v553
  %740 = vmatprep.subr.bf16.mxu0 %v557
  %741 = vmatpush1.bf16.msra.mxu0 %v556
  %742 = vmatprep.subr.bf16.mxu0 %v560
  %743 = vmatpush1.bf16.msra.mxu0 %v559
  %744 = vmatprep.subr.bf16.mxu0 %v563
  %745 = vmatpush1.bf16.msra.mxu0 %v562
  %746 = vmatprep.subr.bf16.mxu0 %v566
  %747 = vmatpush1.bf16.msra.mxu0 %v565
  %748 = vmatprep.subr.bf16.mxu0 %v569
  %749 = vmatpush1.bf16.msra.mxu0 %v568
  %750 = vmatprep.subr.bf16.mxu0 %v572
  %751 = vmatpush1.bf16.msra.mxu0 %v571
  %752 = vmatprep.subr.bf16.mxu0 %v575
  %753 = vmatpush1.bf16.msra.mxu0 %v574
  %754 = vmatprep.subr.bf16.mxu0 %v578
  %755 = vmatpush1.bf16.msra.mxu0 %v577
  %756 = vmatprep.mubr.bf16.mxu0 %v205
  %757 = vmatmul.mubr.bf16.gmra.mrb[0].mxu0 %v204
  %v758 = vpop.f32.mrb[0].mxu0
  %v759 = vadd.f32 %v186, %v758
  %v760 = vpop.f32.mrb[0].mxu0
  %v761 = vadd.f32 %v190, %v760
  %v762 = vpop.f32.mrb[0].mxu0
  %v763 = vpop.f32.mrb[0].mxu0
  %764 = vdwg.mxu0
  %765 = vmatprep.subr.bf16.mxu0 %v581
  %766 = vmatpush1.bf16.msra.mxu0 %v580
  %767 = vmatprep.subr.bf16.mxu0 %v584
  %768 = vmatpush1.bf16.msra.mxu0 %v583
  %769 = vmatprep.subr.bf16.mxu0 %v587
  %770 = vmatpush1.bf16.msra.mxu0 %v586
  %771 = vmatprep.subr.bf16.mxu0 %v590
  %772 = vmatpush1.bf16.msra.mxu0 %v589
  %773 = vmatprep.subr.bf16.mxu0 %v593
  %774 = vmatpush1.bf16.msra.mxu0 %v592
  %775 = vmatprep.subr.bf16.mxu0 %v596
  %776 = vmatpush1.bf16.msra.mxu0 %v595
  %777 = vmatprep.subr.bf16.mxu0 %v599
  %778 = vmatpush1.bf16.msra.mxu0 %v598
  %779 = vmatprep.subr.bf16.mxu0 %v602
  %780 = vmatpush1.bf16.msra.mxu0 %v601
  %781 = vmatprep.subr.bf16.mxu0 %v605
  %782 = vmatpush1.bf16.msra.mxu0 %v604
  %783 = vmatprep.subr.bf16.mxu0 %v608
  %784 = vmatpush1.bf16.msra.mxu0 %v607
  %785 = vmatprep.subr.bf16.mxu0 %v611
  %786 = vmatpush1.bf16.msra.mxu0 %v610
  %787 = vmatprep.subr.bf16.mxu0 %v614
  %788 = vmatpush1.bf16.msra.mxu0 %v613
  %789 = vmatprep.subr.bf16.mxu0 %v617
  %790 = vmatpush1.bf16.msra.mxu0 %v616
  %791 = vmatprep.subr.bf16.mxu0 %v620
  %792 = vmatpush1.bf16.msra.mxu0 %v619
  %793 = vmatprep.subr.bf16.mxu0 %v623
  %794 = vmatpush1.bf16.msra.mxu0 %v622
  %795 = vmatprep.subr.bf16.mxu0 %v626
  %796 = vmatpush1.bf16.msra.mxu0 %v625
  %797 = vmatprep.mubr.bf16.mxu0 %v207
  %798 = vmatmul.mubr.bf16.gmra.mrb[0].mxu0 %v206
  %v799 = vpop.f32.mrb[0].mxu0
  %v800 = vadd.f32 %v759, %v799
  %v801 = vpop.f32.mrb[0].mxu0
  %v802 = vadd.f32 %v761, %v801
  %v803 = vpop.f32.mrb[0].mxu0
  %v804 = vpop.f32.mrb[0].mxu0
  %805 = vdwg.mxu0
  %806 = vmatprep.subr.bf16.mxu0 0
  %807 = vmatpush1.bf16.msra.mxu0 %v534
  %808 = vmatprep.subr.bf16.mxu0 0
  %809 = vmatpush1.bf16.msra.mxu0 %v537
  %810 = vmatprep.subr.bf16.mxu0 0
  %811 = vmatpush1.bf16.msra.mxu0 %v540
  %812 = vmatprep.subr.bf16.mxu0 0
  %813 = vmatpush1.bf16.msra.mxu0 %v543
  %814 = vmatprep.subr.bf16.mxu0 0
  %815 = vmatpush1.bf16.msra.mxu0 %v546
  %816 = vmatprep.subr.bf16.mxu0 0
  %817 = vmatpush1.bf16.msra.mxu0 %v549
  %818 = vmatprep.subr.bf16.mxu0 0
  %819 = vmatpush1.bf16.msra.mxu0 %v552
  %820 = vmatprep.subr.bf16.mxu0 0
  %821 = vmatpush1.bf16.msra.mxu0 %v555
  %822 = vmatprep.subr.bf16.mxu0 0
  %823 = vmatpush1.bf16.msra.mxu0 %v558
  %824 = vmatprep.subr.bf16.mxu0 0
  %825 = vmatpush1.bf16.msra.mxu0 %v561
  %826 = vmatprep.subr.bf16.mxu0 0
  %827 = vmatpush1.bf16.msra.mxu0 %v564
  %828 = vmatprep.subr.bf16.mxu0 0
  %829 = vmatpush1.bf16.msra.mxu0 %v567
  %830 = vmatprep.subr.bf16.mxu0 0
  %831 = vmatpush1.bf16.msra.mxu0 %v570
  %832 = vmatprep.subr.bf16.mxu0 0
  %833 = vmatpush1.bf16.msra.mxu0 %v573
  %834 = vmatprep.subr.bf16.mxu0 0
  %835 = vmatpush1.bf16.msra.mxu0 %v576
  %836 = vmatprep.subr.bf16.mxu0 0
  %837 = vmatpush1.bf16.msra.mxu0 %v579
  %838 = vmatprep.mubr.bf16.mxu0 %v205
  %839 = vmatmul.mubr.bf16.gmra.mrb[0].mxu0 %v204
  %v840 = vpop.f32.mrb[0].mxu0
  %v841 = vadd.f32 %v194, %v840
  %v842 = vpop.f32.mrb[0].mxu0
  %v843 = vpop.f32.mrb[0].mxu0
  %v844 = vpop.f32.mrb[0].mxu0
  %845 = vdwg.mxu0
  %846 = vmatprep.subr.bf16.mxu0 0
  %847 = vmatpush1.bf16.msra.mxu0 %v582
  %848 = vmatprep.subr.bf16.mxu0 0
  %849 = vmatpush1.bf16.msra.mxu0 %v585
  %850 = vmatprep.subr.bf16.mxu0 0
  %851 = vmatpush1.bf16.msra.mxu0 %v588
  %852 = vmatprep.subr.bf16.mxu0 0
  %853 = vmatpush1.bf16.msra.mxu0 %v591
  %854 = vmatprep.subr.bf16.mxu0 0
  %855 = vmatpush1.bf16.msra.mxu0 %v594
  %856 = vmatprep.subr.bf16.mxu0 0
  %857 = vmatpush1.bf16.msra.mxu0 %v597
  %858 = vmatprep.subr.bf16.mxu0 0
  %859 = vmatpush1.bf16.msra.mxu0 %v600
  %860 = vmatprep.subr.bf16.mxu0 0
  %861 = vmatpush1.bf16.msra.mxu0 %v603
  %862 = vmatprep.subr.bf16.mxu0 0
  %863 = vmatpush1.bf16.msra.mxu0 %v606
  %864 = vmatprep.subr.bf16.mxu0 0
  %865 = vmatpush1.bf16.msra.mxu0 %v609
  %866 = vmatprep.subr.bf16.mxu0 0
  %867 = vmatpush1.bf16.msra.mxu0 %v612
  %868 = vmatprep.subr.bf16.mxu0 0
  %869 = vmatpush1.bf16.msra.mxu0 %v615
  %870 = vmatprep.subr.bf16.mxu0 0
  %871 = vmatpush1.bf16.msra.mxu0 %v618
  %872 = vmatprep.subr.bf16.mxu0 0
  %873 = vmatpush1.bf16.msra.mxu0 %v621
  %874 = vmatprep.subr.bf16.mxu0 0
  %875 = vmatpush1.bf16.msra.mxu0 %v624
  %876 = vmatprep.subr.bf16.mxu0 0
  %877 = vmatpush1.bf16.msra.mxu0 %v627
  %878 = vmatprep.mubr.bf16.mxu0 %v207
  %879 = vmatmul.mubr.bf16.gmra.mrb[0].mxu0 %v206
  %v880 = vpop.f32.mrb[0].mxu0
  %v881 = vadd.f32 %v841, %v880
  %v882 = vpop.f32.mrb[0].mxu0
  %v883 = vpop.f32.mrb[0].mxu0
  %v884 = vpop.f32.mrb[0].mxu0
  %885 = vdwg.mxu0
  %v886 = vld [vmem:[%s4] sm:$0x3f]
  %v887 = vld [vmem:[%s5] sm:$0x3f]
  %v888 = vld [vmem:[%s6] sm:$0x3f]
  %890 = vset.pattern.permute.xlu0 0
  %891 = vperm.xlu0 %890, %v888
  %v892 = vpop.permute.xlu0 %891
  %v894 = vld [vmem:[%s7] sm:$0x3f]
  %896 = vset.pattern.permute.xlu0 0
  %897 = vperm.xlu0 %896, %v894
  %v898 = vpop.permute.xlu0 %897
  %901 = vset.pattern.permute.xlu0 0
  %902 = vperm.xlu0 %901, %v886
  %v903 = vpop.permute.xlu0 %902
  %v905 = vlaneseq
  %v906 = vshrl.u32 %v905, 7
  %v907 = vsub.s32 0, %v906
  %v908 = vrot.slane %v800, %v907
  %v909 = vlaneseq
  %v910 = vshrl.u32 %v909, 7
  %v911 = vsub.s32 0, %v910
  %v912 = vrot.slane %v802, %v911
  %v913 = vlaneseq
  %v914 = vshrl.u32 %v913, 7
  %v915 = vsub.s32 0, %v914
  %v916 = vrot.slane %v881, %v915
  %v917 = vmul.f32 %v903, %v908
  %v918 = vmul.f32 %v903, %v912
  %v919 = vmul.f32 %v903, %v916
  %v920 = vadd.f32 %v892, %v917
  %v921 = vadd.f32 %v892, %v918
  %v922 = vadd.f32 %v892, %v919
  %924 = vset.pattern.permute.xlu0 0
  %925 = vperm.xlu0 %924, %v887
  %v926 = vpop.permute.xlu0 %925
  %v928 = vmul.f32 %v926, %v908
  %v929 = vmul.f32 %v926, %v912
  %v930 = vmul.f32 %v926, %v916
  %v931 = vadd.f32 %v898, %v928
  %v932 = vadd.f32 %v898, %v929
  %v933 = vadd.f32 %v898, %v930
  %934 = vset.pattern.permute.xlu0 1
  %935 = vperm.xlu0 %934, %v886
  %v936 = vpop.permute.xlu0 %935
  %v938 = vlaneseq
  %v939 = vshrl.u32 %v938, 7
  %v940 = vsub.s32 1, %v939
  %v941 = vrot.slane %v800, %v940
  %v942 = vlaneseq
  %v943 = vshrl.u32 %v942, 7
  %v944 = vsub.s32 1, %v943
  %v945 = vrot.slane %v802, %v944
  %v946 = vlaneseq
  %v947 = vshrl.u32 %v946, 7
  %v948 = vsub.s32 1, %v947
  %v949 = vrot.slane %v881, %v948
  %v950 = vmul.f32 %v936, %v941
  %v951 = vmul.f32 %v936, %v945
  %v952 = vmul.f32 %v936, %v949
  %v953 = vadd.f32 %v920, %v950
  %v954 = vadd.f32 %v921, %v951
  %v955 = vadd.f32 %v922, %v952
  %956 = vset.pattern.permute.xlu0 1
  %957 = vperm.xlu0 %956, %v887
  %v958 = vpop.permute.xlu0 %957
  %v960 = vmul.f32 %v958, %v941
  %v961 = vmul.f32 %v958, %v945
  %v962 = vmul.f32 %v958, %v949
  %v963 = vadd.f32 %v931, %v960
  %v964 = vadd.f32 %v932, %v961
  %v965 = vadd.f32 %v933, %v962
  %966 = vset.pattern.permute.xlu0 2
  %967 = vperm.xlu0 %966, %v886
  %v968 = vpop.permute.xlu0 %967
  %v970 = vlaneseq
  %v971 = vshrl.u32 %v970, 7
  %v972 = vsub.s32 2, %v971
  %v973 = vrot.slane %v800, %v972
  %v974 = vlaneseq
  %v975 = vshrl.u32 %v974, 7
  %v976 = vsub.s32 2, %v975
  %v977 = vrot.slane %v802, %v976
  %v978 = vlaneseq
  %v979 = vshrl.u32 %v978, 7
  %v980 = vsub.s32 2, %v979
  %v981 = vrot.slane %v881, %v980
  %v982 = vmul.f32 %v968, %v973
  %v983 = vmul.f32 %v968, %v977
  %v984 = vmul.f32 %v968, %v981
  %v985 = vadd.f32 %v953, %v982
  %v986 = vadd.f32 %v954, %v983
  %v987 = vadd.f32 %v955, %v984
  %988 = vset.pattern.permute.xlu0 2
  %989 = vperm.xlu0 %988, %v887
  %v990 = vpop.permute.xlu0 %989
  %v992 = vmul.f32 %v990, %v973
  %v993 = vmul.f32 %v990, %v977
  %v994 = vmul.f32 %v990, %v981
  %v995 = vadd.f32 %v963, %v992
  %v996 = vadd.f32 %v964, %v993
  %v997 = vadd.f32 %v965, %v994
  %998 = vset.pattern.permute.xlu0 3
  %999 = vperm.xlu0 %998, %v886
  %v1000 = vpop.permute.xlu0 %999
  %v1002 = vlaneseq
  %v1003 = vshrl.u32 %v1002, 7
  %v1004 = vsub.s32 3, %v1003
  %v1005 = vrot.slane %v800, %v1004
  %v1006 = vlaneseq
  %v1007 = vshrl.u32 %v1006, 7
  %v1008 = vsub.s32 3, %v1007
  %v1009 = vrot.slane %v802, %v1008
  %v1010 = vlaneseq
  %v1011 = vshrl.u32 %v1010, 7
  %v1012 = vsub.s32 3, %v1011
  %v1013 = vrot.slane %v881, %v1012
  %v1014 = vmul.f32 %v1000, %v1005
  %v1015 = vmul.f32 %v1000, %v1009
  %v1016 = vmul.f32 %v1000, %v1013
  %v1017 = vadd.f32 %v985, %v1014
  %v1018 = vadd.f32 %v986, %v1015
  %v1019 = vadd.f32 %v987, %v1016
  %1020 = vset.pattern.permute.xlu0 3
  %1021 = vperm.xlu0 %1020, %v887
  %v1022 = vpop.permute.xlu0 %1021
  %v1024 = vmul.f32 %v1022, %v1005
  %v1025 = vmul.f32 %v1022, %v1009
  %v1026 = vmul.f32 %v1022, %v1013
  %v1027 = vadd.f32 %v995, %v1024
  %v1028 = vadd.f32 %v996, %v1025
  %v1029 = vadd.f32 %v997, %v1026
  %1030 = vset.pattern.permute.xlu0 4
  %1031 = vperm.xlu0 %1030, %v886
  %v1032 = vpop.permute.xlu0 %1031
  %v1034 = vlaneseq
  %v1035 = vshrl.u32 %v1034, 7
  %v1036 = vsub.s32 4, %v1035
  %v1037 = vrot.slane %v800, %v1036
  %v1038 = vlaneseq
  %v1039 = vshrl.u32 %v1038, 7
  %v1040 = vsub.s32 4, %v1039
  %v1041 = vrot.slane %v802, %v1040
  %v1042 = vlaneseq
  %v1043 = vshrl.u32 %v1042, 7
  %v1044 = vsub.s32 4, %v1043
  %v1045 = vrot.slane %v881, %v1044
  %v1046 = vmul.f32 %v1032, %v1037
  %v1047 = vmul.f32 %v1032, %v1041
  %v1048 = vmul.f32 %v1032, %v1045
  %v1049 = vadd.f32 %v1017, %v1046
  %v1050 = vadd.f32 %v1018, %v1047
  %v1051 = vadd.f32 %v1019, %v1048
  %1052 = vset.pattern.permute.xlu0 4
  %1053 = vperm.xlu0 %1052, %v887
  %v1054 = vpop.permute.xlu0 %1053
  %v1056 = vmul.f32 %v1054, %v1037
  %v1057 = vmul.f32 %v1054, %v1041
  %v1058 = vmul.f32 %v1054, %v1045
  %v1059 = vadd.f32 %v1027, %v1056
  %v1060 = vadd.f32 %v1028, %v1057
  %v1061 = vadd.f32 %v1029, %v1058
  %1062 = vset.pattern.permute.xlu0 5
  %1063 = vperm.xlu0 %1062, %v886
  %v1064 = vpop.permute.xlu0 %1063
  %v1066 = vlaneseq
  %v1067 = vshrl.u32 %v1066, 7
  %v1068 = vsub.s32 5, %v1067
  %v1069 = vrot.slane %v800, %v1068
  %v1070 = vlaneseq
  %v1071 = vshrl.u32 %v1070, 7
  %v1072 = vsub.s32 5, %v1071
  %v1073 = vrot.slane %v802, %v1072
  %v1074 = vlaneseq
  %v1075 = vshrl.u32 %v1074, 7
  %v1076 = vsub.s32 5, %v1075
  %v1077 = vrot.slane %v881, %v1076
  %v1078 = vmul.f32 %v1064, %v1069
  %v1079 = vmul.f32 %v1064, %v1073
  %v1080 = vmul.f32 %v1064, %v1077
  %v1081 = vadd.f32 %v1049, %v1078
  %v1082 = vadd.f32 %v1050, %v1079
  %v1083 = vadd.f32 %v1051, %v1080
  %1084 = vset.pattern.permute.xlu0 5
  %1085 = vperm.xlu0 %1084, %v887
  %v1086 = vpop.permute.xlu0 %1085
  %v1088 = vmul.f32 %v1086, %v1069
  %v1089 = vmul.f32 %v1086, %v1073
  %v1090 = vmul.f32 %v1086, %v1077
  %v1091 = vadd.f32 %v1059, %v1088
  %v1092 = vadd.f32 %v1060, %v1089
  %v1093 = vadd.f32 %v1061, %v1090
  %v1094 = vmul.f32 %v1091, 0.5
  %v1095 = vmul.f32 %v1092, 0.5
  %v1096 = vmul.f32 %v1093, 0.5
  %v1097 = vtanh.pop %v1094
  %v1098 = vtanh.pop %v1095
  %v1099 = vtanh.pop %v1096
  %v1100 = vadd.f32 %v1097, 1.0
  %v1101 = vadd.f32 %v1098, 1.0
  %v1102 = vadd.f32 %v1099, 1.0
  %v1103 = vmul.f32 %v1100, 0.5
  %v1104 = vmul.f32 %v1101, 0.5
  %v1105 = vmul.f32 %v1102, 0.5
  %v1106 = vmul.f32 %v1081, %v1103
  %v1107 = vmul.f32 %v1082, %v1104
  %v1108 = vmul.f32 %v1083, %v1105
  %v1109 = vld [vmem:[%s8] sm:$0x3f]
  %1111 = vset.pattern.permute.xlu0 0
  %1112 = vperm.xlu0 %1111, %v1109
  %v1113 = vpop.permute.xlu0 %1112
  %v1115 = vmul.f32 %v1113, 0.0
  %v1116 = vmul.f32 %v1113, %v1106
  %v1117 = vmul.f32 %v1113, %v1107
  %v1118 = vmul.f32 %v1113, %v1108
  %v1119 = vadd.f32 %v1115, 0.0
  %v1120 = vadd.f32 %v1116, 0.0
  %v1121 = vadd.f32 %v1117, 0.0
  %v1122 = vadd.f32 %v1118, 0.0
  %1123 = vset.pattern.permute.xlu0 1
  %1124 = vperm.xlu0 %1123, %v1109
  %v1125 = vpop.permute.xlu0 %1124
  %v1127 = vmul.f32 %v1125, 0.0
  %v1128 = vmul.f32 %v1125, %v1106
  %v1129 = vmul.f32 %v1125, %v1107
  %v1130 = vmul.f32 %v1125, %v1108
  %1135 = vrot.lane.b32.xlu0 %v1127, 127
  %v1136 = vpop.permute.xlu0 %1135
  %1137 = vrot.lane.b32.xlu0 %v1128, 127
  %v1138 = vpop.permute.xlu0 %1137
  %1139 = vrot.lane.b32.xlu0 %v1129, 127
  %v1140 = vpop.permute.xlu0 %1139
  %1141 = vrot.lane.b32.xlu0 %v1130, 127
  %v1142 = vpop.permute.xlu0 %1141
  %vm1143 = vcmask 1039360
  %v1144 = vsel %vm1143, %v1136, %v1138
  %v1145 = vsel %vm1143, %v1138, %v1140
  %v1146 = vsel %vm1143, %v1140, %v1142
  %v1151 = vadd.f32 %v1119, %v1144
  %v1152 = vadd.f32 %v1120, %v1145
  %v1153 = vadd.f32 %v1121, %v1146
  %v1154 = vadd.f32 %v1122, %v1142
  %1155 = vset.pattern.permute.xlu0 2
  %1156 = vperm.xlu0 %1155, %v1109
  %v1157 = vpop.permute.xlu0 %1156
  %v1159 = vmul.f32 %v1157, 0.0
  %v1160 = vmul.f32 %v1157, %v1106
  %v1161 = vmul.f32 %v1157, %v1107
  %v1162 = vmul.f32 %v1157, %v1108
  %1167 = vrot.lane.b32.xlu0 %v1159, 126
  %v1168 = vpop.permute.xlu0 %1167
  %1169 = vrot.lane.b32.xlu0 %v1160, 126
  %v1170 = vpop.permute.xlu0 %1169
  %1171 = vrot.lane.b32.xlu0 %v1161, 126
  %v1172 = vpop.permute.xlu0 %1171
  %1173 = vrot.lane.b32.xlu0 %v1162, 126
  %v1174 = vpop.permute.xlu0 %1173
  %vm1175 = vcmask 1031168
  %v1176 = vsel %vm1175, %v1168, %v1170
  %v1177 = vsel %vm1175, %v1170, %v1172
  %v1178 = vsel %vm1175, %v1172, %v1174
  %v1183 = vadd.f32 %v1151, %v1176
  %v1184 = vadd.f32 %v1152, %v1177
  %v1185 = vadd.f32 %v1153, %v1178
  %v1186 = vadd.f32 %v1154, %v1174
  %1187 = vset.pattern.permute.xlu0 3
  %1188 = vperm.xlu0 %1187, %v1109
  %v1189 = vpop.permute.xlu0 %1188
  %v1191 = vmul.f32 %v1189, 0.0
  %v1192 = vmul.f32 %v1189, %v1106
  %v1193 = vmul.f32 %v1189, %v1107
  %v1194 = vmul.f32 %v1189, %v1108
  %1199 = vrot.lane.b32.xlu0 %v1191, 125
  %v1200 = vpop.permute.xlu0 %1199
  %1201 = vrot.lane.b32.xlu0 %v1192, 125
  %v1202 = vpop.permute.xlu0 %1201
  %1203 = vrot.lane.b32.xlu0 %v1193, 125
  %v1204 = vpop.permute.xlu0 %1203
  %1205 = vrot.lane.b32.xlu0 %v1194, 125
  %v1206 = vpop.permute.xlu0 %1205
  %vm1207 = vcmask 1022976
  %v1208 = vsel %vm1207, %v1200, %v1202
  %v1209 = vsel %vm1207, %v1202, %v1204
  %v1210 = vsel %vm1207, %v1204, %v1206
  %v1215 = vadd.f32 %v1183, %v1208
  %v1216 = vadd.f32 %v1184, %v1209
  %v1217 = vadd.f32 %v1185, %v1210
  %v1218 = vadd.f32 %v1186, %v1206
  %1219 = vset.pattern.permute.xlu0 4
  %1220 = vperm.xlu0 %1219, %v1109
  %v1221 = vpop.permute.xlu0 %1220
  %v1223 = vmul.f32 %v1221, 0.0
  %v1224 = vmul.f32 %v1221, %v1106
  %v1225 = vmul.f32 %v1221, %v1107
  %v1226 = vmul.f32 %v1221, %v1108
  %1231 = vrot.lane.b32.xlu0 %v1223, 124
  %v1232 = vpop.permute.xlu0 %1231
  %1233 = vrot.lane.b32.xlu0 %v1224, 124
  %v1234 = vpop.permute.xlu0 %1233
  %1235 = vrot.lane.b32.xlu0 %v1225, 124
  %v1236 = vpop.permute.xlu0 %1235
  %1237 = vrot.lane.b32.xlu0 %v1226, 124
  %v1238 = vpop.permute.xlu0 %1237
  %vm1239 = vcmask 1014784
  %v1240 = vsel %vm1239, %v1232, %v1234
  %v1241 = vsel %vm1239, %v1234, %v1236
  %v1242 = vsel %vm1239, %v1236, %v1238
  %v1247 = vadd.f32 %v1215, %v1240
  %v1248 = vadd.f32 %v1216, %v1241
  %v1249 = vadd.f32 %v1217, %v1242
  %v1250 = vadd.f32 %v1218, %v1238
  %1251 = vset.pattern.permute.xlu0 5
  %1252 = vperm.xlu0 %1251, %v1109
  %v1253 = vpop.permute.xlu0 %1252
  %v1255 = vmul.f32 %v1253, 0.0
  %v1256 = vmul.f32 %v1253, %v1106
  %v1257 = vmul.f32 %v1253, %v1107
  %v1258 = vmul.f32 %v1253, %v1108
  %1263 = vrot.lane.b32.xlu0 %v1255, 123
  %v1264 = vpop.permute.xlu0 %1263
  %1265 = vrot.lane.b32.xlu0 %v1256, 123
  %v1266 = vpop.permute.xlu0 %1265
  %1267 = vrot.lane.b32.xlu0 %v1257, 123
  %v1268 = vpop.permute.xlu0 %1267
  %1269 = vrot.lane.b32.xlu0 %v1258, 123
  %v1270 = vpop.permute.xlu0 %1269
  %vm1271 = vcmask 1006592
  %v1272 = vsel %vm1271, %v1264, %v1266
  %v1273 = vsel %vm1271, %v1266, %v1268
  %v1274 = vsel %vm1271, %v1268, %v1270
  %v1279 = vadd.f32 %v1247, %v1272
  %v1280 = vadd.f32 %v1248, %v1273
  %v1281 = vadd.f32 %v1249, %v1274
  %v1282 = vadd.f32 %v1250, %v1270
  %1283 = vset.pattern.permute.xlu0 6
  %1284 = vperm.xlu0 %1283, %v1109
  %v1285 = vpop.permute.xlu0 %1284
  %v1287 = vmul.f32 %v1285, 0.0
  %v1288 = vmul.f32 %v1285, %v1106
  %v1289 = vmul.f32 %v1285, %v1107
  %v1290 = vmul.f32 %v1285, %v1108
  %1295 = vrot.lane.b32.xlu0 %v1287, 122
  %v1296 = vpop.permute.xlu0 %1295
  %1297 = vrot.lane.b32.xlu0 %v1288, 122
  %v1298 = vpop.permute.xlu0 %1297
  %1299 = vrot.lane.b32.xlu0 %v1289, 122
  %v1300 = vpop.permute.xlu0 %1299
  %1301 = vrot.lane.b32.xlu0 %v1290, 122
  %v1302 = vpop.permute.xlu0 %1301
  %vm1303 = vcmask 998400
  %v1304 = vsel %vm1303, %v1296, %v1298
  %v1305 = vsel %vm1303, %v1298, %v1300
  %v1306 = vsel %vm1303, %v1300, %v1302
  %v1311 = vadd.f32 %v1279, %v1304
  %v1312 = vadd.f32 %v1280, %v1305
  %v1313 = vadd.f32 %v1281, %v1306
  %v1314 = vadd.f32 %v1282, %v1302
  %1315 = vset.pattern.permute.xlu0 7
  %1316 = vperm.xlu0 %1315, %v1109
  %v1317 = vpop.permute.xlu0 %1316
  %v1319 = vmul.f32 %v1317, 0.0
  %v1320 = vmul.f32 %v1317, %v1106
  %v1321 = vmul.f32 %v1317, %v1107
  %v1322 = vmul.f32 %v1317, %v1108
  %1327 = vrot.lane.b32.xlu0 %v1319, 121
  %v1328 = vpop.permute.xlu0 %1327
  %1329 = vrot.lane.b32.xlu0 %v1320, 121
  %v1330 = vpop.permute.xlu0 %1329
  %1331 = vrot.lane.b32.xlu0 %v1321, 121
  %v1332 = vpop.permute.xlu0 %1331
  %1333 = vrot.lane.b32.xlu0 %v1322, 121
  %v1334 = vpop.permute.xlu0 %1333
  %vm1335 = vcmask 990208
  %v1336 = vsel %vm1335, %v1328, %v1330
  %v1337 = vsel %vm1335, %v1330, %v1332
  %v1338 = vsel %vm1335, %v1332, %v1334
  %v1343 = vadd.f32 %v1311, %v1336
  %v1344 = vadd.f32 %v1312, %v1337
  %v1345 = vadd.f32 %v1313, %v1338
  %v1346 = vadd.f32 %v1314, %v1334
  %1347 = vset.pattern.permute.xlu0 8
  %1348 = vperm.xlu0 %1347, %v1109
  %v1349 = vpop.permute.xlu0 %1348
  %v1351 = vmul.f32 %v1349, 0.0
  %v1352 = vmul.f32 %v1349, %v1106
  %v1353 = vmul.f32 %v1349, %v1107
  %v1354 = vmul.f32 %v1349, %v1108
  %1359 = vrot.lane.b32.xlu0 %v1351, 120
  %v1360 = vpop.permute.xlu0 %1359
  %1361 = vrot.lane.b32.xlu0 %v1352, 120
  %v1362 = vpop.permute.xlu0 %1361
  %1363 = vrot.lane.b32.xlu0 %v1353, 120
  %v1364 = vpop.permute.xlu0 %1363
  %1365 = vrot.lane.b32.xlu0 %v1354, 120
  %v1366 = vpop.permute.xlu0 %1365
  %vm1367 = vcmask 982016
  %v1368 = vsel %vm1367, %v1360, %v1362
  %v1369 = vsel %vm1367, %v1362, %v1364
  %v1370 = vsel %vm1367, %v1364, %v1366
  %v1375 = vadd.f32 %v1343, %v1368
  %v1376 = vadd.f32 %v1344, %v1369
  %v1377 = vadd.f32 %v1345, %v1370
  %v1378 = vadd.f32 %v1346, %v1366
  %1379 = vset.pattern.permute.xlu0 9
  %1380 = vperm.xlu0 %1379, %v1109
  %v1381 = vpop.permute.xlu0 %1380
  %v1383 = vmul.f32 %v1381, 0.0
  %v1384 = vmul.f32 %v1381, %v1106
  %v1385 = vmul.f32 %v1381, %v1107
  %v1386 = vmul.f32 %v1381, %v1108
  %1391 = vrot.lane.b32.xlu0 %v1383, 119
  %v1392 = vpop.permute.xlu0 %1391
  %1393 = vrot.lane.b32.xlu0 %v1384, 119
  %v1394 = vpop.permute.xlu0 %1393
  %1395 = vrot.lane.b32.xlu0 %v1385, 119
  %v1396 = vpop.permute.xlu0 %1395
  %1397 = vrot.lane.b32.xlu0 %v1386, 119
  %v1398 = vpop.permute.xlu0 %1397
  %vm1399 = vcmask 973824
  %v1400 = vsel %vm1399, %v1392, %v1394
  %v1401 = vsel %vm1399, %v1394, %v1396
  %v1402 = vsel %vm1399, %v1396, %v1398
  %v1407 = vadd.f32 %v1375, %v1400
  %v1408 = vadd.f32 %v1376, %v1401
  %v1409 = vadd.f32 %v1377, %v1402
  %v1410 = vadd.f32 %v1378, %v1398
  %1411 = vset.pattern.permute.xlu0 10
  %1412 = vperm.xlu0 %1411, %v1109
  %v1413 = vpop.permute.xlu0 %1412
  %v1415 = vmul.f32 %v1413, 0.0
  %v1416 = vmul.f32 %v1413, %v1106
  %v1417 = vmul.f32 %v1413, %v1107
  %v1418 = vmul.f32 %v1413, %v1108
  %1423 = vrot.lane.b32.xlu0 %v1415, 118
  %v1424 = vpop.permute.xlu0 %1423
  %1425 = vrot.lane.b32.xlu0 %v1416, 118
  %v1426 = vpop.permute.xlu0 %1425
  %1427 = vrot.lane.b32.xlu0 %v1417, 118
  %v1428 = vpop.permute.xlu0 %1427
  %1429 = vrot.lane.b32.xlu0 %v1418, 118
  %v1430 = vpop.permute.xlu0 %1429
  %vm1431 = vcmask 965632
  %v1432 = vsel %vm1431, %v1424, %v1426
  %v1433 = vsel %vm1431, %v1426, %v1428
  %v1434 = vsel %vm1431, %v1428, %v1430
  %v1439 = vadd.f32 %v1407, %v1432
  %v1440 = vadd.f32 %v1408, %v1433
  %v1441 = vadd.f32 %v1409, %v1434
  %v1442 = vadd.f32 %v1410, %v1430
  %1443 = vset.pattern.permute.xlu0 11
  %1444 = vperm.xlu0 %1443, %v1109
  %v1445 = vpop.permute.xlu0 %1444
  %v1447 = vmul.f32 %v1445, 0.0
  %v1448 = vmul.f32 %v1445, %v1106
  %v1449 = vmul.f32 %v1445, %v1107
  %v1450 = vmul.f32 %v1445, %v1108
  %1455 = vrot.lane.b32.xlu0 %v1447, 117
  %v1456 = vpop.permute.xlu0 %1455
  %1457 = vrot.lane.b32.xlu0 %v1448, 117
  %v1458 = vpop.permute.xlu0 %1457
  %1459 = vrot.lane.b32.xlu0 %v1449, 117
  %v1460 = vpop.permute.xlu0 %1459
  %1461 = vrot.lane.b32.xlu0 %v1450, 117
  %v1462 = vpop.permute.xlu0 %1461
  %vm1463 = vcmask 957440
  %v1464 = vsel %vm1463, %v1456, %v1458
  %v1465 = vsel %vm1463, %v1458, %v1460
  %v1466 = vsel %vm1463, %v1460, %v1462
  %v1471 = vadd.f32 %v1439, %v1464
  %v1472 = vadd.f32 %v1440, %v1465
  %v1473 = vadd.f32 %v1441, %v1466
  %v1474 = vadd.f32 %v1442, %v1462
  %1475 = vset.pattern.permute.xlu0 12
  %1476 = vperm.xlu0 %1475, %v1109
  %v1477 = vpop.permute.xlu0 %1476
  %v1479 = vmul.f32 %v1477, 0.0
  %v1480 = vmul.f32 %v1477, %v1106
  %v1481 = vmul.f32 %v1477, %v1107
  %v1482 = vmul.f32 %v1477, %v1108
  %1487 = vrot.lane.b32.xlu0 %v1479, 116
  %v1488 = vpop.permute.xlu0 %1487
  %1489 = vrot.lane.b32.xlu0 %v1480, 116
  %v1490 = vpop.permute.xlu0 %1489
  %1491 = vrot.lane.b32.xlu0 %v1481, 116
  %v1492 = vpop.permute.xlu0 %1491
  %1493 = vrot.lane.b32.xlu0 %v1482, 116
  %v1494 = vpop.permute.xlu0 %1493
  %vm1495 = vcmask 949248
  %v1496 = vsel %vm1495, %v1488, %v1490
  %v1497 = vsel %vm1495, %v1490, %v1492
  %v1498 = vsel %vm1495, %v1492, %v1494
  %v1503 = vadd.f32 %v1471, %v1496
  %v1504 = vadd.f32 %v1472, %v1497
  %v1505 = vadd.f32 %v1473, %v1498
  %v1506 = vadd.f32 %v1474, %v1494
  %1507 = vset.pattern.permute.xlu0 13
  %1508 = vperm.xlu0 %1507, %v1109
  %v1509 = vpop.permute.xlu0 %1508
  %v1511 = vmul.f32 %v1509, 0.0
  %v1512 = vmul.f32 %v1509, %v1106
  %v1513 = vmul.f32 %v1509, %v1107
  %v1514 = vmul.f32 %v1509, %v1108
  %1519 = vrot.lane.b32.xlu0 %v1511, 115
  %v1520 = vpop.permute.xlu0 %1519
  %1521 = vrot.lane.b32.xlu0 %v1512, 115
  %v1522 = vpop.permute.xlu0 %1521
  %1523 = vrot.lane.b32.xlu0 %v1513, 115
  %v1524 = vpop.permute.xlu0 %1523
  %1525 = vrot.lane.b32.xlu0 %v1514, 115
  %v1526 = vpop.permute.xlu0 %1525
  %vm1527 = vcmask 941056
  %v1528 = vsel %vm1527, %v1520, %v1522
  %v1529 = vsel %vm1527, %v1522, %v1524
  %v1530 = vsel %vm1527, %v1524, %v1526
  %v1535 = vadd.f32 %v1503, %v1528
  %v1536 = vadd.f32 %v1504, %v1529
  %v1537 = vadd.f32 %v1505, %v1530
  %v1538 = vadd.f32 %v1506, %v1526
  %1539 = vset.pattern.permute.xlu0 14
  %1540 = vperm.xlu0 %1539, %v1109
  %v1541 = vpop.permute.xlu0 %1540
  %v1543 = vmul.f32 %v1541, 0.0
  %v1544 = vmul.f32 %v1541, %v1106
  %v1545 = vmul.f32 %v1541, %v1107
  %v1546 = vmul.f32 %v1541, %v1108
  %1551 = vrot.lane.b32.xlu0 %v1543, 114
  %v1552 = vpop.permute.xlu0 %1551
  %1553 = vrot.lane.b32.xlu0 %v1544, 114
  %v1554 = vpop.permute.xlu0 %1553
  %1555 = vrot.lane.b32.xlu0 %v1545, 114
  %v1556 = vpop.permute.xlu0 %1555
  %1557 = vrot.lane.b32.xlu0 %v1546, 114
  %v1558 = vpop.permute.xlu0 %1557
  %vm1559 = vcmask 932864
  %v1560 = vsel %vm1559, %v1552, %v1554
  %v1561 = vsel %vm1559, %v1554, %v1556
  %v1562 = vsel %vm1559, %v1556, %v1558
  %v1567 = vadd.f32 %v1535, %v1560
  %v1568 = vadd.f32 %v1536, %v1561
  %v1569 = vadd.f32 %v1537, %v1562
  %v1570 = vadd.f32 %v1538, %v1558
  %1571 = vset.pattern.permute.xlu0 15
  %1572 = vperm.xlu0 %1571, %v1109
  %v1573 = vpop.permute.xlu0 %1572
  %v1575 = vmul.f32 %v1573, %v1106
  %v1576 = vmul.f32 %v1573, %v1107
  %v1577 = vmul.f32 %v1573, %v1108
  %1581 = vrot.lane.b32.xlu0 %v1575, 113
  %v1582 = vpop.permute.xlu0 %1581
  %1583 = vrot.lane.b32.xlu0 %v1576, 113
  %v1584 = vpop.permute.xlu0 %1583
  %1585 = vrot.lane.b32.xlu0 %v1577, 113
  %v1586 = vpop.permute.xlu0 %1585
  %vm1587 = vcmask 924672
  %v1588 = vsel %vm1587, %v1582, %v1584
  %v1589 = vsel %vm1587, %v1584, %v1586
  %v1594 = vadd.f32 %v1567, %v1582
  %v1595 = vadd.f32 %v1568, %v1588
  %v1596 = vadd.f32 %v1569, %v1589
  %v1597 = vadd.f32 %v1570, %v1586
  %1598 = vset.pattern.permute.xlu0 16
  %1599 = vperm.xlu0 %1598, %v1109
  %v1600 = vpop.permute.xlu0 %1599
  %v1602 = vmul.f32 %v1600, %v1106
  %v1603 = vmul.f32 %v1600, %v1107
  %v1604 = vmul.f32 %v1600, %v1108
  %v1605 = vmul.f32 %v1600, 0.0
  %1610 = vrot.lane.b32.xlu0 %v1602, 112
  %v1611 = vpop.permute.xlu0 %1610
  %1612 = vrot.lane.b32.xlu0 %v1603, 112
  %v1613 = vpop.permute.xlu0 %1612
  %1614 = vrot.lane.b32.xlu0 %v1604, 112
  %v1615 = vpop.permute.xlu0 %1614
  %1616 = vrot.lane.b32.xlu0 %v1605, 112
  %v1617 = vpop.permute.xlu0 %1616
  %vm1618 = vcmask 916480
  %v1619 = vsel %vm1618, %v1611, %v1613
  %v1620 = vsel %vm1618, %v1613, %v1615
  %v1621 = vsel %vm1618, %v1615, %v1617
  %v1626 = vadd.f32 %v1594, %v1611
  %v1627 = vadd.f32 %v1595, %v1619
  %v1628 = vadd.f32 %v1596, %v1620
  %v1629 = vadd.f32 %v1597, %v1621
  %1630 = vset.pattern.permute.xlu0 17
  %1631 = vperm.xlu0 %1630, %v1109
  %v1632 = vpop.permute.xlu0 %1631
  %v1634 = vmul.f32 %v1632, %v1106
  %v1635 = vmul.f32 %v1632, %v1107
  %v1636 = vmul.f32 %v1632, %v1108
  %v1637 = vmul.f32 %v1632, 0.0
  %1642 = vrot.lane.b32.xlu0 %v1634, 111
  %v1643 = vpop.permute.xlu0 %1642
  %1644 = vrot.lane.b32.xlu0 %v1635, 111
  %v1645 = vpop.permute.xlu0 %1644
  %1646 = vrot.lane.b32.xlu0 %v1636, 111
  %v1647 = vpop.permute.xlu0 %1646
  %1648 = vrot.lane.b32.xlu0 %v1637, 111
  %v1649 = vpop.permute.xlu0 %1648
  %vm1650 = vcmask 908288
  %v1651 = vsel %vm1650, %v1643, %v1645
  %v1652 = vsel %vm1650, %v1645, %v1647
  %v1653 = vsel %vm1650, %v1647, %v1649
  %v1658 = vadd.f32 %v1626, %v1643
  %v1659 = vadd.f32 %v1627, %v1651
  %v1660 = vadd.f32 %v1628, %v1652
  %v1661 = vadd.f32 %v1629, %v1653
  %1662 = vset.pattern.permute.xlu0 18
  %1663 = vperm.xlu0 %1662, %v1109
  %v1664 = vpop.permute.xlu0 %1663
  %v1666 = vmul.f32 %v1664, %v1106
  %v1667 = vmul.f32 %v1664, %v1107
  %v1668 = vmul.f32 %v1664, %v1108
  %v1669 = vmul.f32 %v1664, 0.0
  %1674 = vrot.lane.b32.xlu0 %v1666, 110
  %v1675 = vpop.permute.xlu0 %1674
  %1676 = vrot.lane.b32.xlu0 %v1667, 110
  %v1677 = vpop.permute.xlu0 %1676
  %1678 = vrot.lane.b32.xlu0 %v1668, 110
  %v1679 = vpop.permute.xlu0 %1678
  %1680 = vrot.lane.b32.xlu0 %v1669, 110
  %v1681 = vpop.permute.xlu0 %1680
  %vm1682 = vcmask 900096
  %v1683 = vsel %vm1682, %v1675, %v1677
  %v1684 = vsel %vm1682, %v1677, %v1679
  %v1685 = vsel %vm1682, %v1679, %v1681
  %v1690 = vadd.f32 %v1658, %v1675
  %v1691 = vadd.f32 %v1659, %v1683
  %v1692 = vadd.f32 %v1660, %v1684
  %v1693 = vadd.f32 %v1661, %v1685
  %1694 = vset.pattern.permute.xlu0 19
  %1695 = vperm.xlu0 %1694, %v1109
  %v1696 = vpop.permute.xlu0 %1695
  %v1698 = vmul.f32 %v1696, %v1106
  %v1699 = vmul.f32 %v1696, %v1107
  %v1700 = vmul.f32 %v1696, %v1108
  %v1701 = vmul.f32 %v1696, 0.0
  %1706 = vrot.lane.b32.xlu0 %v1698, 109
  %v1707 = vpop.permute.xlu0 %1706
  %1708 = vrot.lane.b32.xlu0 %v1699, 109
  %v1709 = vpop.permute.xlu0 %1708
  %1710 = vrot.lane.b32.xlu0 %v1700, 109
  %v1711 = vpop.permute.xlu0 %1710
  %1712 = vrot.lane.b32.xlu0 %v1701, 109
  %v1713 = vpop.permute.xlu0 %1712
  %vm1714 = vcmask 891904
  %v1715 = vsel %vm1714, %v1707, %v1709
  %v1716 = vsel %vm1714, %v1709, %v1711
  %v1717 = vsel %vm1714, %v1711, %v1713
  %v1722 = vadd.f32 %v1690, %v1707
  %v1723 = vadd.f32 %v1691, %v1715
  %v1724 = vadd.f32 %v1692, %v1716
  %v1725 = vadd.f32 %v1693, %v1717
  %1726 = vset.pattern.permute.xlu0 20
  %1727 = vperm.xlu0 %1726, %v1109
  %v1728 = vpop.permute.xlu0 %1727
  %v1730 = vmul.f32 %v1728, %v1106
  %v1731 = vmul.f32 %v1728, %v1107
  %v1732 = vmul.f32 %v1728, %v1108
  %v1733 = vmul.f32 %v1728, 0.0
  %1738 = vrot.lane.b32.xlu0 %v1730, 108
  %v1739 = vpop.permute.xlu0 %1738
  %1740 = vrot.lane.b32.xlu0 %v1731, 108
  %v1741 = vpop.permute.xlu0 %1740
  %1742 = vrot.lane.b32.xlu0 %v1732, 108
  %v1743 = vpop.permute.xlu0 %1742
  %1744 = vrot.lane.b32.xlu0 %v1733, 108
  %v1745 = vpop.permute.xlu0 %1744
  %vm1746 = vcmask 883712
  %v1747 = vsel %vm1746, %v1739, %v1741
  %v1748 = vsel %vm1746, %v1741, %v1743
  %v1749 = vsel %vm1746, %v1743, %v1745
  %v1754 = vadd.f32 %v1722, %v1739
  %v1755 = vadd.f32 %v1723, %v1747
  %v1756 = vadd.f32 %v1724, %v1748
  %v1757 = vadd.f32 %v1725, %v1749
  %1758 = vset.pattern.permute.xlu0 21
  %1759 = vperm.xlu0 %1758, %v1109
  %v1760 = vpop.permute.xlu0 %1759
  %v1762 = vmul.f32 %v1760, %v1106
  %v1763 = vmul.f32 %v1760, %v1107
  %v1764 = vmul.f32 %v1760, %v1108
  %v1765 = vmul.f32 %v1760, 0.0
  %1770 = vrot.lane.b32.xlu0 %v1762, 107
  %v1771 = vpop.permute.xlu0 %1770
  %1772 = vrot.lane.b32.xlu0 %v1763, 107
  %v1773 = vpop.permute.xlu0 %1772
  %1774 = vrot.lane.b32.xlu0 %v1764, 107
  %v1775 = vpop.permute.xlu0 %1774
  %1776 = vrot.lane.b32.xlu0 %v1765, 107
  %v1777 = vpop.permute.xlu0 %1776
  %vm1778 = vcmask 875520
  %v1779 = vsel %vm1778, %v1771, %v1773
  %v1780 = vsel %vm1778, %v1773, %v1775
  %v1781 = vsel %vm1778, %v1775, %v1777
  %v1786 = vadd.f32 %v1754, %v1771
  %v1787 = vadd.f32 %v1755, %v1779
  %v1788 = vadd.f32 %v1756, %v1780
  %v1789 = vadd.f32 %v1757, %v1781
  %1790 = vset.pattern.permute.xlu0 22
  %1791 = vperm.xlu0 %1790, %v1109
  %v1792 = vpop.permute.xlu0 %1791
  %v1794 = vmul.f32 %v1792, %v1106
  %v1795 = vmul.f32 %v1792, %v1107
  %v1796 = vmul.f32 %v1792, %v1108
  %v1797 = vmul.f32 %v1792, 0.0
  %1802 = vrot.lane.b32.xlu0 %v1794, 106
  %v1803 = vpop.permute.xlu0 %1802
  %1804 = vrot.lane.b32.xlu0 %v1795, 106
  %v1805 = vpop.permute.xlu0 %1804
  %1806 = vrot.lane.b32.xlu0 %v1796, 106
  %v1807 = vpop.permute.xlu0 %1806
  %1808 = vrot.lane.b32.xlu0 %v1797, 106
  %v1809 = vpop.permute.xlu0 %1808
  %vm1810 = vcmask 867328
  %v1811 = vsel %vm1810, %v1803, %v1805
  %v1812 = vsel %vm1810, %v1805, %v1807
  %v1813 = vsel %vm1810, %v1807, %v1809
  %v1818 = vadd.f32 %v1786, %v1803
  %v1819 = vadd.f32 %v1787, %v1811
  %v1820 = vadd.f32 %v1788, %v1812
  %v1821 = vadd.f32 %v1789, %v1813
  %1822 = vset.pattern.permute.xlu0 23
  %1823 = vperm.xlu0 %1822, %v1109
  %v1824 = vpop.permute.xlu0 %1823
  %v1826 = vmul.f32 %v1824, %v1106
  %v1827 = vmul.f32 %v1824, %v1107
  %v1828 = vmul.f32 %v1824, %v1108
  %v1829 = vmul.f32 %v1824, 0.0
  %1834 = vrot.lane.b32.xlu0 %v1826, 105
  %v1835 = vpop.permute.xlu0 %1834
  %1836 = vrot.lane.b32.xlu0 %v1827, 105
  %v1837 = vpop.permute.xlu0 %1836
  %1838 = vrot.lane.b32.xlu0 %v1828, 105
  %v1839 = vpop.permute.xlu0 %1838
  %1840 = vrot.lane.b32.xlu0 %v1829, 105
  %v1841 = vpop.permute.xlu0 %1840
  %vm1842 = vcmask 859136
  %v1843 = vsel %vm1842, %v1835, %v1837
  %v1844 = vsel %vm1842, %v1837, %v1839
  %v1845 = vsel %vm1842, %v1839, %v1841
  %v1850 = vadd.f32 %v1818, %v1835
  %v1851 = vadd.f32 %v1819, %v1843
  %v1852 = vadd.f32 %v1820, %v1844
  %v1853 = vadd.f32 %v1821, %v1845
  %1854 = vset.pattern.permute.xlu0 24
  %1855 = vperm.xlu0 %1854, %v1109
  %v1856 = vpop.permute.xlu0 %1855
  %v1858 = vmul.f32 %v1856, %v1106
  %v1859 = vmul.f32 %v1856, %v1107
  %v1860 = vmul.f32 %v1856, %v1108
  %v1861 = vmul.f32 %v1856, 0.0
  %1866 = vrot.lane.b32.xlu0 %v1858, 104
  %v1867 = vpop.permute.xlu0 %1866
  %1868 = vrot.lane.b32.xlu0 %v1859, 104
  %v1869 = vpop.permute.xlu0 %1868
  %1870 = vrot.lane.b32.xlu0 %v1860, 104
  %v1871 = vpop.permute.xlu0 %1870
  %1872 = vrot.lane.b32.xlu0 %v1861, 104
  %v1873 = vpop.permute.xlu0 %1872
  %vm1874 = vcmask 850944
  %v1875 = vsel %vm1874, %v1867, %v1869
  %v1876 = vsel %vm1874, %v1869, %v1871
  %v1877 = vsel %vm1874, %v1871, %v1873
  %v1882 = vadd.f32 %v1850, %v1867
  %v1883 = vadd.f32 %v1851, %v1875
  %v1884 = vadd.f32 %v1852, %v1876
  %v1885 = vadd.f32 %v1853, %v1877
  %1886 = vset.pattern.permute.xlu0 25
  %1887 = vperm.xlu0 %1886, %v1109
  %v1888 = vpop.permute.xlu0 %1887
  %v1890 = vmul.f32 %v1888, %v1106
  %v1891 = vmul.f32 %v1888, %v1107
  %v1892 = vmul.f32 %v1888, %v1108
  %v1893 = vmul.f32 %v1888, 0.0
  %1898 = vrot.lane.b32.xlu0 %v1890, 103
  %v1899 = vpop.permute.xlu0 %1898
  %1900 = vrot.lane.b32.xlu0 %v1891, 103
  %v1901 = vpop.permute.xlu0 %1900
  %1902 = vrot.lane.b32.xlu0 %v1892, 103
  %v1903 = vpop.permute.xlu0 %1902
  %1904 = vrot.lane.b32.xlu0 %v1893, 103
  %v1905 = vpop.permute.xlu0 %1904
  %vm1906 = vcmask 842752
  %v1907 = vsel %vm1906, %v1899, %v1901
  %v1908 = vsel %vm1906, %v1901, %v1903
  %v1909 = vsel %vm1906, %v1903, %v1905
  %v1914 = vadd.f32 %v1882, %v1899
  %v1915 = vadd.f32 %v1883, %v1907
  %v1916 = vadd.f32 %v1884, %v1908
  %v1917 = vadd.f32 %v1885, %v1909
  %1918 = vset.pattern.permute.xlu0 26
  %1919 = vperm.xlu0 %1918, %v1109
  %v1920 = vpop.permute.xlu0 %1919
  %v1922 = vmul.f32 %v1920, %v1106
  %v1923 = vmul.f32 %v1920, %v1107
  %v1924 = vmul.f32 %v1920, %v1108
  %v1925 = vmul.f32 %v1920, 0.0
  %1930 = vrot.lane.b32.xlu0 %v1922, 102
  %v1931 = vpop.permute.xlu0 %1930
  %1932 = vrot.lane.b32.xlu0 %v1923, 102
  %v1933 = vpop.permute.xlu0 %1932
  %1934 = vrot.lane.b32.xlu0 %v1924, 102
  %v1935 = vpop.permute.xlu0 %1934
  %1936 = vrot.lane.b32.xlu0 %v1925, 102
  %v1937 = vpop.permute.xlu0 %1936
  %vm1938 = vcmask 834560
  %v1939 = vsel %vm1938, %v1931, %v1933
  %v1940 = vsel %vm1938, %v1933, %v1935
  %v1941 = vsel %vm1938, %v1935, %v1937
  %v1946 = vadd.f32 %v1914, %v1931
  %v1947 = vadd.f32 %v1915, %v1939
  %v1948 = vadd.f32 %v1916, %v1940
  %v1949 = vadd.f32 %v1917, %v1941
  %1950 = vset.pattern.permute.xlu0 27
  %1951 = vperm.xlu0 %1950, %v1109
  %v1952 = vpop.permute.xlu0 %1951
  %v1954 = vmul.f32 %v1952, %v1106
  %v1955 = vmul.f32 %v1952, %v1107
  %v1956 = vmul.f32 %v1952, %v1108
  %v1957 = vmul.f32 %v1952, 0.0
  %1962 = vrot.lane.b32.xlu0 %v1954, 101
  %v1963 = vpop.permute.xlu0 %1962
  %1964 = vrot.lane.b32.xlu0 %v1955, 101
  %v1965 = vpop.permute.xlu0 %1964
  %1966 = vrot.lane.b32.xlu0 %v1956, 101
  %v1967 = vpop.permute.xlu0 %1966
  %1968 = vrot.lane.b32.xlu0 %v1957, 101
  %v1969 = vpop.permute.xlu0 %1968
  %vm1970 = vcmask 826368
  %v1971 = vsel %vm1970, %v1963, %v1965
  %v1972 = vsel %vm1970, %v1965, %v1967
  %v1973 = vsel %vm1970, %v1967, %v1969
  %v1978 = vadd.f32 %v1946, %v1963
  %v1979 = vadd.f32 %v1947, %v1971
  %v1980 = vadd.f32 %v1948, %v1972
  %v1981 = vadd.f32 %v1949, %v1973
  %1982 = vset.pattern.permute.xlu0 28
  %1983 = vperm.xlu0 %1982, %v1109
  %v1984 = vpop.permute.xlu0 %1983
  %v1986 = vmul.f32 %v1984, %v1106
  %v1987 = vmul.f32 %v1984, %v1107
  %v1988 = vmul.f32 %v1984, %v1108
  %v1989 = vmul.f32 %v1984, 0.0
  %1994 = vrot.lane.b32.xlu0 %v1986, 100
  %v1995 = vpop.permute.xlu0 %1994
  %1996 = vrot.lane.b32.xlu0 %v1987, 100
  %v1997 = vpop.permute.xlu0 %1996
  %1998 = vrot.lane.b32.xlu0 %v1988, 100
  %v1999 = vpop.permute.xlu0 %1998
  %2000 = vrot.lane.b32.xlu0 %v1989, 100
  %v2001 = vpop.permute.xlu0 %2000
  %vm2002 = vcmask 818176
  %v2003 = vsel %vm2002, %v1995, %v1997
  %v2004 = vsel %vm2002, %v1997, %v1999
  %v2005 = vsel %vm2002, %v1999, %v2001
  %v2010 = vadd.f32 %v1978, %v1995
  %v2011 = vadd.f32 %v1979, %v2003
  %v2012 = vadd.f32 %v1980, %v2004
  %v2013 = vadd.f32 %v1981, %v2005
  %2014 = vset.pattern.permute.xlu0 29
  %2015 = vperm.xlu0 %2014, %v1109
  %v2016 = vpop.permute.xlu0 %2015
  %v2018 = vmul.f32 %v2016, %v1106
  %v2019 = vmul.f32 %v2016, %v1107
  %v2020 = vmul.f32 %v2016, %v1108
  %v2021 = vmul.f32 %v2016, 0.0
  %2026 = vrot.lane.b32.xlu0 %v2018, 99
  %v2027 = vpop.permute.xlu0 %2026
  %2028 = vrot.lane.b32.xlu0 %v2019, 99
  %v2029 = vpop.permute.xlu0 %2028
  %2030 = vrot.lane.b32.xlu0 %v2020, 99
  %v2031 = vpop.permute.xlu0 %2030
  %2032 = vrot.lane.b32.xlu0 %v2021, 99
  %v2033 = vpop.permute.xlu0 %2032
  %vm2034 = vcmask 809984
  %v2035 = vsel %vm2034, %v2027, %v2029
  %v2036 = vsel %vm2034, %v2029, %v2031
  %v2037 = vsel %vm2034, %v2031, %v2033
  %v2042 = vadd.f32 %v2010, %v2027
  %v2043 = vadd.f32 %v2011, %v2035
  %v2044 = vadd.f32 %v2012, %v2036
  %v2045 = vadd.f32 %v2013, %v2037
  %2046 = vset.pattern.permute.xlu0 30
  %2047 = vperm.xlu0 %2046, %v1109
  %v2048 = vpop.permute.xlu0 %2047
  %v2050 = vmul.f32 %v2048, %v1106
  %v2051 = vmul.f32 %v2048, %v1107
  %v2052 = vmul.f32 %v2048, %v1108
  %v2053 = vmul.f32 %v2048, 0.0
  %2058 = vrot.lane.b32.xlu0 %v2050, 98
  %v2059 = vpop.permute.xlu0 %2058
  %2060 = vrot.lane.b32.xlu0 %v2051, 98
  %v2061 = vpop.permute.xlu0 %2060
  %2062 = vrot.lane.b32.xlu0 %v2052, 98
  %v2063 = vpop.permute.xlu0 %2062
  %2064 = vrot.lane.b32.xlu0 %v2053, 98
  %v2065 = vpop.permute.xlu0 %2064
  %vm2066 = vcmask 801792
  %v2067 = vsel %vm2066, %v2059, %v2061
  %v2068 = vsel %vm2066, %v2061, %v2063
  %v2069 = vsel %vm2066, %v2063, %v2065
  %v2074 = vadd.f32 %v2042, %v2059
  %v2075 = vadd.f32 %v2043, %v2067
  %v2076 = vadd.f32 %v2044, %v2068
  %v2077 = vadd.f32 %v2045, %v2069
  %v2078 = vld [vmem:[%s9] sm:$0x3f]
  %2080 = vset.pattern.permute.xlu0 0
  %2081 = vperm.xlu0 %2080, %v2078
  %v2082 = vpop.permute.xlu0 %2081
  %v2084 = vmul.f32 %v2074, %v2082
  %v2085 = vmul.f32 %v2075, %v2082
  %v2086 = vmul.f32 %v2076, %v2082
  %v2087 = vmul.f32 %v2077, %v2082
  %v2088 = vld [vmem:[%s10] sm:$0x3f]
  %2090 = vset.pattern.permute.xlu0 0
  %2091 = vperm.xlu0 %2090, %v2088
  %v2092 = vpop.permute.xlu0 %2091
  %v2094 = vadd.f32 %v2084, %v2092
  %v2095 = vadd.f32 %v2085, %v2092
  %v2096 = vadd.f32 %v2086, %v2092
  %v2097 = vadd.f32 %v2087, %v2092
  %v2098 = vld [vmem:[%s11] sm:$0x3f]
  %v2099 = vld [vmem:[%s12] sm:$0x3f]
  %2101 = vset.pattern.permute.xlu0 0
  %2102 = vperm.xlu0 %2101, %v2099
  %v2103 = vpop.permute.xlu0 %2102
  %2106 = vset.pattern.permute.xlu0 0
  %2107 = vperm.xlu0 %2106, %v2098
  %v2108 = vpop.permute.xlu0 %2107
  %v2110 = vlaneseq
  %v2111 = vshrl.u32 %v2110, 7
  %v2112 = vsub.s32 0, %v2111
  %v2113 = vrot.slane %v2094, %v2112
  %v2114 = vlaneseq
  %v2115 = vshrl.u32 %v2114, 7
  %v2116 = vsub.s32 0, %v2115
  %v2117 = vrot.slane %v2095, %v2116
  %v2118 = vlaneseq
  %v2119 = vshrl.u32 %v2118, 7
  %v2120 = vsub.s32 0, %v2119
  %v2121 = vrot.slane %v2096, %v2120
  %v2122 = vlaneseq
  %v2123 = vshrl.u32 %v2122, 7
  %v2124 = vsub.s32 0, %v2123
  %v2125 = vrot.slane %v2097, %v2124
  %v2126 = vmul.f32 %v2108, %v2113
  %v2127 = vmul.f32 %v2108, %v2117
  %v2128 = vmul.f32 %v2108, %v2121
  %v2129 = vmul.f32 %v2108, %v2125
  %v2130 = vadd.f32 %v2103, %v2126
  %v2131 = vadd.f32 %v2103, %v2127
  %v2132 = vadd.f32 %v2103, %v2128
  %v2133 = vadd.f32 %v2103, %v2129
  %2134 = vset.pattern.permute.xlu0 1
  %2135 = vperm.xlu0 %2134, %v2098
  %v2136 = vpop.permute.xlu0 %2135
  %v2138 = vlaneseq
  %v2139 = vshrl.u32 %v2138, 7
  %v2140 = vsub.s32 1, %v2139
  %v2141 = vrot.slane %v2094, %v2140
  %v2142 = vlaneseq
  %v2143 = vshrl.u32 %v2142, 7
  %v2144 = vsub.s32 1, %v2143
  %v2145 = vrot.slane %v2095, %v2144
  %v2146 = vlaneseq
  %v2147 = vshrl.u32 %v2146, 7
  %v2148 = vsub.s32 1, %v2147
  %v2149 = vrot.slane %v2096, %v2148
  %v2150 = vlaneseq
  %v2151 = vshrl.u32 %v2150, 7
  %v2152 = vsub.s32 1, %v2151
  %v2153 = vrot.slane %v2097, %v2152
  %v2154 = vmul.f32 %v2136, %v2141
  %v2155 = vmul.f32 %v2136, %v2145
  %v2156 = vmul.f32 %v2136, %v2149
  %v2157 = vmul.f32 %v2136, %v2153
  %v2158 = vadd.f32 %v2130, %v2154
  %v2159 = vadd.f32 %v2131, %v2155
  %v2160 = vadd.f32 %v2132, %v2156
  %v2161 = vadd.f32 %v2133, %v2157
  %2162 = vset.pattern.permute.xlu0 2
  %2163 = vperm.xlu0 %2162, %v2098
  %v2164 = vpop.permute.xlu0 %2163
  %v2166 = vlaneseq
  %v2167 = vshrl.u32 %v2166, 7
  %v2168 = vsub.s32 2, %v2167
  %v2169 = vrot.slane %v2094, %v2168
  %v2170 = vlaneseq
  %v2171 = vshrl.u32 %v2170, 7
  %v2172 = vsub.s32 2, %v2171
  %v2173 = vrot.slane %v2095, %v2172
  %v2174 = vlaneseq
  %v2175 = vshrl.u32 %v2174, 7
  %v2176 = vsub.s32 2, %v2175
  %v2177 = vrot.slane %v2096, %v2176
  %v2178 = vlaneseq
  %v2179 = vshrl.u32 %v2178, 7
  %v2180 = vsub.s32 2, %v2179
  %v2181 = vrot.slane %v2097, %v2180
  %v2182 = vmul.f32 %v2164, %v2169
  %v2183 = vmul.f32 %v2164, %v2173
  %v2184 = vmul.f32 %v2164, %v2177
  %v2185 = vmul.f32 %v2164, %v2181
  %v2186 = vadd.f32 %v2158, %v2182
  %v2187 = vadd.f32 %v2159, %v2183
  %v2188 = vadd.f32 %v2160, %v2184
  %v2189 = vadd.f32 %v2161, %v2185
  %2190 = vset.pattern.permute.xlu0 3
  %2191 = vperm.xlu0 %2190, %v2098
  %v2192 = vpop.permute.xlu0 %2191
  %v2194 = vlaneseq
  %v2195 = vshrl.u32 %v2194, 7
  %v2196 = vsub.s32 3, %v2195
  %v2197 = vrot.slane %v2094, %v2196
  %v2198 = vlaneseq
  %v2199 = vshrl.u32 %v2198, 7
  %v2200 = vsub.s32 3, %v2199
  %v2201 = vrot.slane %v2095, %v2200
  %v2202 = vlaneseq
  %v2203 = vshrl.u32 %v2202, 7
  %v2204 = vsub.s32 3, %v2203
  %v2205 = vrot.slane %v2096, %v2204
  %v2206 = vlaneseq
  %v2207 = vshrl.u32 %v2206, 7
  %v2208 = vsub.s32 3, %v2207
  %v2209 = vrot.slane %v2097, %v2208
  %v2210 = vmul.f32 %v2192, %v2197
  %v2211 = vmul.f32 %v2192, %v2201
  %v2212 = vmul.f32 %v2192, %v2205
  %v2213 = vmul.f32 %v2192, %v2209
  %v2214 = vadd.f32 %v2186, %v2210
  %v2215 = vadd.f32 %v2187, %v2211
  %v2216 = vadd.f32 %v2188, %v2212
  %v2217 = vadd.f32 %v2189, %v2213
  %2218 = vset.pattern.permute.xlu0 4
  %2219 = vperm.xlu0 %2218, %v2098
  %v2220 = vpop.permute.xlu0 %2219
  %v2222 = vlaneseq
  %v2223 = vshrl.u32 %v2222, 7
  %v2224 = vsub.s32 4, %v2223
  %v2225 = vrot.slane %v2094, %v2224
  %v2226 = vlaneseq
  %v2227 = vshrl.u32 %v2226, 7
  %v2228 = vsub.s32 4, %v2227
  %v2229 = vrot.slane %v2095, %v2228
  %v2230 = vlaneseq
  %v2231 = vshrl.u32 %v2230, 7
  %v2232 = vsub.s32 4, %v2231
  %v2233 = vrot.slane %v2096, %v2232
  %v2234 = vlaneseq
  %v2235 = vshrl.u32 %v2234, 7
  %v2236 = vsub.s32 4, %v2235
  %v2237 = vrot.slane %v2097, %v2236
  %v2238 = vmul.f32 %v2220, %v2225
  %v2239 = vmul.f32 %v2220, %v2229
  %v2240 = vmul.f32 %v2220, %v2233
  %v2241 = vmul.f32 %v2220, %v2237
  %v2242 = vadd.f32 %v2214, %v2238
  %v2243 = vadd.f32 %v2215, %v2239
  %v2244 = vadd.f32 %v2216, %v2240
  %v2245 = vadd.f32 %v2217, %v2241
  %2246 = vset.pattern.permute.xlu0 5
  %2247 = vperm.xlu0 %2246, %v2098
  %v2248 = vpop.permute.xlu0 %2247
  %v2250 = vlaneseq
  %v2251 = vshrl.u32 %v2250, 7
  %v2252 = vsub.s32 5, %v2251
  %v2253 = vrot.slane %v2094, %v2252
  %v2254 = vlaneseq
  %v2255 = vshrl.u32 %v2254, 7
  %v2256 = vsub.s32 5, %v2255
  %v2257 = vrot.slane %v2095, %v2256
  %v2258 = vlaneseq
  %v2259 = vshrl.u32 %v2258, 7
  %v2260 = vsub.s32 5, %v2259
  %v2261 = vrot.slane %v2096, %v2260
  %v2262 = vlaneseq
  %v2263 = vshrl.u32 %v2262, 7
  %v2264 = vsub.s32 5, %v2263
  %v2265 = vrot.slane %v2097, %v2264
  %v2266 = vmul.f32 %v2248, %v2253
  %v2267 = vmul.f32 %v2248, %v2257
  %v2268 = vmul.f32 %v2248, %v2261
  %v2269 = vmul.f32 %v2248, %v2265
  %v2270 = vadd.f32 %v2242, %v2266
  %v2271 = vadd.f32 %v2243, %v2267
  %v2272 = vadd.f32 %v2244, %v2268
  %v2273 = vadd.f32 %v2245, %v2269
  %v2274 = vld [vmem:[%s3] sm:$0x3f]
  %v2275 = vld [vmem:[%s3 + $0x8] sm:$0x3f]
  %v2276 = vld [vmem:[%s3 + $0x10] sm:$0x3f]
  %2280 = vrot.lane.b32.xlu0 %v2274, 113
  %v2281 = vpop.permute.xlu0 %2280
  %2282 = vrot.lane.b32.xlu0 %v2275, 113
  %v2283 = vpop.permute.xlu0 %2282
  %2284 = vrot.lane.b32.xlu0 %v2276, 113
  %v2285 = vpop.permute.xlu0 %2284
  %v2286 = vsel %vm1587, %v2281, %v2283
  %v2287 = vsel %vm1587, %v2283, %v2285
  %v2292 = vadd.f32 %v2270, %v2281
  %v2293 = vadd.f32 %v2271, %v2286
  %v2294 = vadd.f32 %v2272, %v2287
  %v2295 = vadd.f32 %v2273, %v2285
  %2300 = vrot.lane.b32.xlu0 %v2292, 15
  %v2301 = vpop.permute.xlu0 %2300
  %2302 = vrot.lane.b32.xlu0 %v2293, 15
  %v2303 = vpop.permute.xlu0 %2302
  %2304 = vrot.lane.b32.xlu0 %v2294, 15
  %v2305 = vpop.permute.xlu0 %2304
  %2306 = vrot.lane.b32.xlu0 %v2295, 15
  %v2307 = vpop.permute.xlu0 %2306
  %vm2308 = vcmask 121856
  %v2309 = vsel %vm2308, %v2301, %v2303
  %v2310 = vsel %vm2308, %v2303, %v2305
  %v2311 = vsel %vm2308, %v2305, %v2307
  %vm2315 = vcmask 1045504
  %v2316 = vsel %vm2315, %v2309, 0.0
  %v2317 = vsel %vm2315, %v2310, 0.0
  %v2318 = vadd.f32 %v2316, %v2317
  %v2319 = vsel %vm2315, %v2311, 0.0
  %v2320 = vadd.f32 %v2318, %v2319
  %2321 = vadd.xlane.f32.xlu0 %v2320
  %v2322 = vpop.xlane.xlu0 %2321
  %v2323 = vrcp.pop 384.0
  %v2324 = vmul.f32 %v2322, %v2323
  %v2325 = vsub.f32 %v2292, %v2324
  %v2326 = vsub.f32 %v2293, %v2324
  %v2327 = vsub.f32 %v2294, %v2324
  %v2328 = vsub.f32 %v2295, %v2324
  %v2329 = vmul.f32 %v2325, %v2325
  %v2330 = vmul.f32 %v2326, %v2326
  %v2331 = vmul.f32 %v2327, %v2327
  %v2332 = vmul.f32 %v2328, %v2328
  %2337 = vrot.lane.b32.xlu0 %v2329, 15
  %v2338 = vpop.permute.xlu0 %2337
  %2339 = vrot.lane.b32.xlu0 %v2330, 15
  %v2340 = vpop.permute.xlu0 %2339
  %2341 = vrot.lane.b32.xlu0 %v2331, 15
  %v2342 = vpop.permute.xlu0 %2341
  %2343 = vrot.lane.b32.xlu0 %v2332, 15
  %v2344 = vpop.permute.xlu0 %2343
  %v2345 = vsel %vm2308, %v2338, %v2340
  %v2346 = vsel %vm2308, %v2340, %v2342
  %v2347 = vsel %vm2308, %v2342, %v2344
  %v2351 = vsel %vm2315, %v2345, 0.0
  %v2352 = vsel %vm2315, %v2346, 0.0
  %v2353 = vadd.f32 %v2351, %v2352
  %v2354 = vsel %vm2315, %v2347, 0.0
  %v2355 = vadd.f32 %v2353, %v2354
  %2356 = vadd.xlane.f32.xlu0 %v2355
  %v2357 = vpop.xlane.xlu0 %2356
  %v2358 = vmul.f32 %v2357, %v2323
  %v2359 = vadd.f32 %v2358, 1e-12
  %v2360 = vrsqrt.pop %v2359
  %v2361 = vmul.f32 %v2325, %v2360
  %v2362 = vmul.f32 %v2326, %v2360
  %v2363 = vmul.f32 %v2327, %v2360
  %v2364 = vmul.f32 %v2328, %v2360
  %v2365 = vld [vmem:[%s13] sm:$0x7]
  %v2367 = vlaneseq
  %v2368 = vshrl.u32 %v2367, 7
  %v2369 = vsub.s32 0, %v2368
  %v2370 = vrot.slane %v2365, %v2369
  %v2371 = vlaneseq
  %v2372 = vshrl.u32 %v2371, 7
  %v2373 = vsub.s32 1, %v2372
  %v2374 = vrot.slane %v2365, %v2373
  %v2375 = vlaneseq
  %v2376 = vshrl.u32 %v2375, 7
  %v2377 = vsub.s32 2, %v2376
  %v2378 = vrot.slane %v2365, %v2377
  %2379 = vrot.lane.b32.xlu0 %v2370, 113
  %v2380 = vpop.permute.xlu0 %2379
  %2381 = vrot.lane.b32.xlu0 %v2374, 113
  %v2382 = vpop.permute.xlu0 %2381
  %2383 = vrot.lane.b32.xlu0 %v2378, 113
  %v2384 = vpop.permute.xlu0 %2383
  %v2385 = vsel %vm1587, %v2380, %v2382
  %v2386 = vsel %vm1587, %v2382, %v2384
  %v2391 = vmul.f32 %v2361, %v2380
  %v2392 = vmul.f32 %v2362, %v2385
  %v2393 = vmul.f32 %v2363, %v2386
  %v2394 = vmul.f32 %v2364, %v2384
  %v2395 = vld [vmem:[%s14] sm:$0x7]
  %v2397 = vlaneseq
  %v2398 = vshrl.u32 %v2397, 7
  %v2399 = vsub.s32 0, %v2398
  %v2400 = vrot.slane %v2395, %v2399
  %v2401 = vlaneseq
  %v2402 = vshrl.u32 %v2401, 7
  %v2403 = vsub.s32 1, %v2402
  %v2404 = vrot.slane %v2395, %v2403
  %v2405 = vlaneseq
  %v2406 = vshrl.u32 %v2405, 7
  %v2407 = vsub.s32 2, %v2406
  %v2408 = vrot.slane %v2395, %v2407
  %2409 = vrot.lane.b32.xlu0 %v2400, 113
  %v2410 = vpop.permute.xlu0 %2409
  %2411 = vrot.lane.b32.xlu0 %v2404, 113
  %v2412 = vpop.permute.xlu0 %2411
  %2413 = vrot.lane.b32.xlu0 %v2408, 113
  %v2414 = vpop.permute.xlu0 %2413
  %v2415 = vsel %vm1587, %v2410, %v2412
  %v2416 = vsel %vm1587, %v2412, %v2414
  %v2421 = vadd.f32 %v2391, %v2410
  %v2422 = vadd.f32 %v2392, %v2415
  %v2423 = vadd.f32 %v2393, %v2416
  %v2424 = vadd.f32 %v2394, %v2414
  %2429 = vrot.lane.b32.xlu0 %v2421, 15
  %v2430 = vpop.permute.xlu0 %2429
  %2431 = vrot.lane.b32.xlu0 %v2422, 15
  %v2432 = vpop.permute.xlu0 %2431
  %2433 = vrot.lane.b32.xlu0 %v2423, 15
  %v2434 = vpop.permute.xlu0 %2433
  %2435 = vrot.lane.b32.xlu0 %v2424, 15
  %v2436 = vpop.permute.xlu0 %2435
  %v2437 = vsel %vm2308, %v2430, %v2432
  %v2438 = vsel %vm2308, %v2432, %v2434
  %v2439 = vsel %vm2308, %v2434, %v2436
  %2443 = vst [vmem:[%s15] sm:$0x3f] %v2437
  %2444 = vst [vmem:[%s15 + $0x8] sm:$0x3f] %v2438
  %2445 = vst [vmem:[%s15 + $0x10] sm:$0x3f] %v2439
  // Predicated region
  $region62: #{bert_output_forward.1} parent=0 // pred_check
    _
  $region63: #{bert_output_forward.1} parent=0 // pred_check_branch
    %2447 = sbr.rel (0) target = $region65
  $region64: #{bert_output_forward.1} parent=0 // pred_region
    _
  $region65: #{bert_output_forward.1} parent=0 // pred_fallthru
    _
  // Predicated region
  $region66: #{bert_output_forward.1} parent=0 // pred_check
    _
  $region67: #{bert_output_forward.1} parent=0 // pred_check_branch
    %2449 = sbr.rel (0) target = $region69
  $region68: #{bert_output_forward.1} parent=0 // pred_region
    _
  $region69: #{bert_output_forward.1} parent=0 // pred_fallthru
    _

</llo_original>
